<compile_context>
chip_gen: v5e
topology: v5e:2x2
jax: 0.10.0
libtpu: 0.0.40
codegen_flags: <defaults>
</compile_context>

<pallas_src>
import functools

import jax
import jax.numpy as jnp
import numpy as np
from jax.experimental import pallas as pl
from jax.experimental.pallas import tpu as pltpu


_VMEM = pl.BlockSpec(memory_space=pltpu.MemorySpace.VMEM)


# ----------------------------------------------------------------------------
# Fused Pallas kernel: LSTM stack (+ directions) + output MLP
# ----------------------------------------------------------------------------
def fused_lstm_ffn_kernel(x_ref, *refs, lstm_depth, num_dir, hidden, seq_len, batch):
    """Fused LSTM stack + output MLP.

    x_ref: (T*B, F) time-major flattened input (row block t holds x[:, t, :]).
    refs (in order):
      per (layer, dir): w_ih (D_in, 4H), w_hh (H, 4H), b (1, 4H)  [cols i,f,o,g]
      w1 (L*D*H, O), w2 (O, O), w3 (O, O)                         [FFN, bias-free]
      o_ref (B, O)                                                [output]
      hseq_a, hseq_b (T*B, D*H), cfeat (B, L*D*H)                 [VMEM scratch]
    """
    T, B, H = seq_len, batch, hidden
    n_w = 3 * lstm_depth * num_dir
    lstm_w = refs[:n_w]
    w1_ref, w2_ref, w3_ref = refs[n_w:n_w + 3]
    o_ref = refs[n_w + 3]
    hseq_a, hseq_b, cfeat = refs[n_w + 4:n_w + 7]
    hseq_bufs = (hseq_a, hseq_b)

    for layer in range(lstm_depth):
        last_layer = layer == lstm_depth - 1
        if layer == 0:
            x_flat = x_ref[...]                              # (T*B, F)
        else:
            x_flat = hseq_bufs[(layer - 1) % 2][...]         # (T*B, D*H)
        hseq_out = hseq_bufs[layer % 2]

        for d in range(num_dir):
            base = 3 * (layer * num_dir + d)
            wih_ref, whh_ref, b_ref = lstm_w[base], lstm_w[base + 1], lstm_w[base + 2]

            # Hoisted input projection: one matmul with a real M = T*B.
            ih = (
                jnp.dot(x_flat, wih_ref[...], preferred_element_type=jnp.float32)
                + b_ref[...]
            )                                                # (T*B, 4H)
            whh = whh_ref[...]                               # (H, 4H)

            h = jnp.zeros((B, H), jnp.float32)
            c = jnp.zeros((B, H), jnp.float32)
            # Fully-unrolled recurrence: only h @ W_hh is on the serial path.
            for t in range(T):
                src = t if d == 0 else T - 1 - t             # original time index
                gates = ih[src * B:(src + 1) * B] + jnp.dot(
                    h, whh, preferred_element_type=jnp.float32
                )                                            # (B, 4H)
                # Gate columns are [i, f, o, g]: one wide sigmoid + one tanh.
                ifo = jax.nn.sigmoid(gates[:, : 3 * H])
                g = jnp.tanh(gates[:, 3 * H:])
                c = ifo[:, H:2 * H] * c + ifo[:, :H] * g
                h = ifo[:, 2 * H:] * jnp.tanh(c)
                if not last_layer:
                    # Next layer's input: hseq at time `src`, direction block d.
                    hseq_out[src * B:(src + 1) * B, d * H:(d + 1) * H] = h
            # PyTorch cn layout: block index = layer * num_dir + d.
            blk = layer * num_dir + d
            cfeat[:, blk * H:(blk + 1) * H] = c

    # SimpleFeedForwardNN(depth=2): Linear(relu) -> Linear(relu) -> Linear(none).
    feat = cfeat[...]                                        # (B, L*D*H)
    h1 = jnp.maximum(jnp.dot(feat, w1_ref[...], preferred_element_type=jnp.float32), 0.0)
    h2 = jnp.maximum(jnp.dot(h1, w2_ref[...], preferred_element_type=jnp.float32), 0.0)
    o_ref[...] = jnp.dot(h2, w3_ref[...], preferred_element_type=jnp.float32)


# ----------------------------------------------------------------------------
# Wrapper
# ----------------------------------------------------------------------------
def _permute_gates(w, hidden):
    """[i, f, g, o] column blocks (PyTorch) -> [i, f, o, g] (kernel layout)."""
    H = hidden
    return jnp.concatenate(
        [w[..., : 2 * H], w[..., 3 * H: 4 * H], w[..., 2 * H: 3 * H]], axis=-1
    )


def lstm_predictor_forward(params, inputs, *, lstm_depth, hidden, bidirectional):
    """Mirrors LSTMPredictor.forward: inputs (B, T, F) -> output (B, output_dim)."""
    num_dir = 2 if bidirectional else 1
    B, T, F = inputs.shape
    H = hidden

    # inputs.permute(1, 0, 2) then flatten time-major -> (T*B, F); done once in XLA.
    x2d = jnp.transpose(inputs, (1, 0, 2)).reshape(T * B, F)

    lstm_args = []
    for layer in range(lstm_depth):
        for d in range(num_dir):
            w_ih, w_hh, b = params["lstm"][(layer, d)]
            lstm_args += [
                _permute_gates(w_ih, H),
                _permute_gates(w_hh, H),
                _permute_gates(b, H),
            ]
    w1, w2, w3 = params["ffn"]
    out_dim = w3.shape[1]

    kernel = functools.partial(
        fused_lstm_ffn_kernel,
        lstm_depth=lstm_depth,
        num_dir=num_dir,
        hidden=H,
        seq_len=T,
        batch=B,
    )
    # TODO(synk): for non-trivial batch add a batch grid axis with
    # dimension_semantics=("parallel",) so v7x's two TensorCores both work; for
    # long sequences chunk T with pltpu.emit_pipeline instead of keeping the
    # whole (T*B, .) slab VMEM-resident (v7x has only 64 MiB VMEM).
    return pl.pallas_call(
        kernel,
        out_shape=jax.ShapeDtypeStruct((B, out_dim), jnp.float32),
        in_specs=[_VMEM] * (1 + len(lstm_args) + 3),
        out_specs=_VMEM,
        scratch_shapes=[
            pltpu.VMEM((T * B, num_dir * H), jnp.float32),   # inter-layer hseq (ping)
            pltpu.VMEM((T * B, num_dir * H), jnp.float32),   # inter-layer hseq (pong)
            pltpu.VMEM((B, lstm_depth * num_dir * H), jnp.float32),  # packed cn
        ],
    )(x2d, *lstm_args, w1, w2, w3)


# ----------------------------------------------------------------------------
# Deterministic parameter init (synthetic; PyTorch [i,f,g,o] gate layout)
# ----------------------------------------------------------------------------
def init_params(key, *, feature_dim, hidden, lstm_depth, bidirectional, output_dim):
    num_dir = 2 if bidirectional else 1
    k = 1.0 / np.sqrt(hidden)
    params = {"lstm": {}, "ffn": None}
    for layer in range(lstm_depth):
        d_in = feature_dim if layer == 0 else hidden * num_dir
        for d in range(num_dir):
            key, k1, k2, k3, k4 = jax.random.split(key, 5)
            w_ih = jax.random.uniform(k1, (d_in, 4 * hidden), jnp.float32, -k, k)
            w_hh = jax.random.uniform(k2, (hidden, 4 * hidden), jnp.float32, -k, k)
            b_ih = jax.random.uniform(k3, (4 * hidden,), jnp.float32, -k, k)
            b_hh = jax.random.uniform(k4, (4 * hidden,), jnp.float32, -k, k)
            params["lstm"][(layer, d)] = (w_ih, w_hh, (b_ih + b_hh)[None, :])
    nn_in = hidden * num_dir * lstm_depth
    key, k1, k2, k3 = jax.random.split(key, 4)
    w1 = jax.random.uniform(k1, (nn_in, output_dim), jnp.float32, -0.1, 0.1)
    w2 = jax.random.uniform(k2, (output_dim, output_dim), jnp.float32, -0.1, 0.1)
    w3 = jax.random.uniform(k3, (output_dim, output_dim), jnp.float32, -0.1, 0.1)
    params["ffn"] = (w1, w2, w3)
    return params


# ----------------------------------------------------------------------------
# Pure-JAX reference (PyTorch gate order / flip semantics) for a sanity check
# ----------------------------------------------------------------------------
def ref_forward(params, inputs, *, lstm_depth, hidden, bidirectional):
    num_dir = 2 if bidirectional else 1
    x = jnp.transpose(inputs, (1, 0, 2))
    cn_list = []
    layer_in = x
    for layer in range(lstm_depth):
        dir_hseqs = []
        for d in range(num_dir):
            w_ih, w_hh, b = params["lstm"][(layer, d)]
            xin = layer_in if d == 0 else jnp.flip(layer_in, axis=0)
            T, B, _ = xin.shape
            h = jnp.zeros((B, hidden), jnp.float32)
            c = jnp.zeros((B, hidden), jnp.float32)
            hs = []
            for t in range(T):
                gates = xin[t] @ w_ih + h @ w_hh + b
                i = jax.nn.sigmoid(gates[:, 0 * hidden:1 * hidden])
                f = jax.nn.sigmoid(gates[:, 1 * hidden:2 * hidden])
                g = jnp.tanh(gates[:, 2 * hidden:3 * hidden])
                o = jax.nn.sigmoid(gates[:, 3 * hidden:4 * hidden])
                c = f * c + i * g
                h = o * jnp.tanh(c)
                hs.append(h)
            hseq = jnp.stack(hs, axis=0)
            if d == 1:
                hseq = jnp.flip(hseq, axis=0)
            dir_hseqs.append(hseq)
            cn_list.append(c)
        layer_in = (
            jnp.concatenate(dir_hseqs, axis=-1) if num_dir == 2 else dir_hseqs[0]
        )
    cn = jnp.stack(cn_list, axis=0)
    out = jnp.transpose(cn, (1, 0, 2)).reshape(inputs.shape[0], -1)
    w1, w2, w3 = params["ffn"]
    out = jnp.maximum(out @ w1, 0.0)
    out = jnp.maximum(out @ w2, 0.0)
    return out @ w3


# ----------------------------------------------------------------------------
if __name__ == "__main__":
    # Small, module-consistent shapes:
    #   dataset[0][0].shape[-1] -> feature_dim = 8
    #   dataset[0][1].shape[-1] -> output_dim  = 4
    BATCH, SEQ, FEAT = 2, 8, 8
    HIDDEN, DEPTH, OUT_DIM = 32, 2, 4

    key = jax.random.PRNGKey(0)
    for bidir in (False, True):
        key, pkey, xkey = jax.random.split(key, 3)
        params = init_params(
            pkey,
            feature_dim=FEAT,
            hidden=HIDDEN,
            lstm_depth=DEPTH,
            bidirectional=bidir,
            output_dim=OUT_DIM,
        )
        inputs = jax.random.normal(xkey, (BATCH, SEQ, FEAT), jnp.float32)

        out = jax.block_until_ready(
            lstm_predictor_forward(
                params, inputs, lstm_depth=DEPTH, hidden=HIDDEN, bidirectional=bidir
            )
        )
        assert out.shape == (BATCH, OUT_DIM), out.shape

        ref = jax.block_until_ready(
            ref_forward(
                params, inputs, lstm_depth=DEPTH, hidden=HIDDEN, bidirectional=bidir
            )
        )
        np.testing.assert_allclose(np.asarray(out), np.asarray(ref), rtol=2e-2, atol=2e-2)

    print("KERNEL_OK")
</pallas_src>

<mosaic_0001>
module attributes {stable_mosaic.version = 11 : i64} {
  func.func @fused_lstm_ffn_kernel(%arg0: memref<16x8xf32, #tpu.memory_space<vmem>>, %arg1: memref<8x128xf32, #tpu.memory_space<vmem>>, %arg2: memref<32x128xf32, #tpu.memory_space<vmem>>, %arg3: memref<1x128xf32, #tpu.memory_space<vmem>>, %arg4: memref<32x128xf32, #tpu.memory_space<vmem>>, %arg5: memref<32x128xf32, #tpu.memory_space<vmem>>, %arg6: memref<1x128xf32, #tpu.memory_space<vmem>>, %arg7: memref<64x4xf32, #tpu.memory_space<vmem>>, %arg8: memref<4x4xf32, #tpu.memory_space<vmem>>, %arg9: memref<4x4xf32, #tpu.memory_space<vmem>>, %arg10: memref<2x4xf32, #tpu.memory_space<vmem>>, %arg11: memref<16x32xf32, #tpu.memory_space<vmem>>, %arg12: memref<16x32xf32, #tpu.memory_space<vmem>>, %arg13: memref<2x64xf32, #tpu.memory_space<vmem>>) attributes {dimension_semantics = [], scalar_prefetch = 0 : i64, scratch_operands = 3 : i64, tpu.core_type = #tpu.core_type<tc>} {
    %c0 = arith.constant 0 : index
    %c0_0 = arith.constant 0 : index
    %0 = vector.load %arg0[%c0, %c0_0] : memref<16x8xf32, #tpu.memory_space<vmem>>, vector<16x8xf32>
    %c0_1 = arith.constant 0 : index
    %c0_2 = arith.constant 0 : index
    %1 = vector.load %arg1[%c0_1, %c0_2] : memref<8x128xf32, #tpu.memory_space<vmem>>, vector<8x128xf32>
    %cst = arith.constant dense<0.000000e+00> : vector<16x128xf32>
    %2 = tpu.matmul %0, %1, %cst {dimension_numbers = #tpu.dot_dimension_numbers<[1], [0], [0], [1], [0, 0, 1, 1], [], []>} : vector<16x8xf32>, vector<8x128xf32>, vector<16x128xf32> -> vector<16x128xf32>
    %c0_3 = arith.constant 0 : index
    %c0_4 = arith.constant 0 : index
    %3 = vector.load %arg3[%c0_3, %c0_4] : memref<1x128xf32, #tpu.memory_space<vmem>>, vector<1x128xf32>
    %4 = vector.broadcast %3 : vector<1x128xf32> to vector<16x128xf32>
    %5 = arith.addf %2, %4 : vector<16x128xf32>
    %c0_5 = arith.constant 0 : index
    %c0_6 = arith.constant 0 : index
    %6 = vector.load %arg2[%c0_5, %c0_6] : memref<32x128xf32, #tpu.memory_space<vmem>>, vector<32x128xf32>
    %cst_7 = arith.constant 0.000000e+00 : f32
    %7 = vector.broadcast %cst_7 : f32 to vector<2x32xf32>
    %cst_8 = arith.constant 0.000000e+00 : f32
    %8 = vector.broadcast %cst_8 : f32 to vector<2x32xf32>
    %9 = vector.extract_strided_slice %5 {offsets = [0, 0], sizes = [2, 128], strides = [1, 1]} : vector<16x128xf32> to vector<2x128xf32>
    %cst_9 = arith.constant dense<0.000000e+00> : vector<2x128xf32>
    %10 = tpu.matmul %7, %6, %cst_9 {dimension_numbers = #tpu.dot_dimension_numbers<[1], [0], [0], [1], [0, 0, 1, 1], [], []>} : vector<2x32xf32>, vector<32x128xf32>, vector<2x128xf32> -> vector<2x128xf32>
    %11 = arith.addf %9, %10 : vector<2x128xf32>
    %12 = vector.extract_strided_slice %11 {offsets = [0, 0], sizes = [2, 96], strides = [1, 1]} : vector<2x128xf32> to vector<2x96xf32>
    %13 = arith.negf %12 : vector<2x96xf32>
    %14 = math.exp %13 : vector<2x96xf32>
    %cst_10 = arith.constant 1.000000e+00 : f32
    %15 = vector.broadcast %cst_10 : f32 to vector<2x96xf32>
    %16 = arith.addf %15, %14 : vector<2x96xf32>
    %17 = arith.divf %15, %16 : vector<2x96xf32>
    %18 = vector.extract_strided_slice %11 {offsets = [0, 96], sizes = [2, 32], strides = [1, 1]} : vector<2x128xf32> to vector<2x32xf32>
    %19 = math.tanh %18 : vector<2x32xf32>
    %20 = vector.extract_strided_slice %17 {offsets = [0, 32], sizes = [2, 32], strides = [1, 1]} : vector<2x96xf32> to vector<2x32xf32>
    %21 = arith.mulf %20, %8 : vector<2x32xf32>
    %22 = vector.extract_strided_slice %17 {offsets = [0, 0], sizes = [2, 32], strides = [1, 1]} : vector<2x96xf32> to vector<2x32xf32>
    %23 = arith.mulf %22, %19 : vector<2x32xf32>
    %24 = arith.addf %21, %23 : vector<2x32xf32>
    %25 = vector.extract_strided_slice %17 {offsets = [0, 64], sizes = [2, 32], strides = [1, 1]} : vector<2x96xf32> to vector<2x32xf32>
    %26 = math.tanh %24 : vector<2x32xf32>
    %27 = arith.mulf %25, %26 : vector<2x32xf32>
    %c0_11 = arith.constant 0 : index
    %c0_12 = arith.constant 0 : index
    %28 = vector.load %arg11[%c0_11, %c0_12] : memref<16x32xf32, #tpu.memory_space<vmem>>, vector<2x32xf32>
    tpu.vector_store %arg11[%c0_11, %c0_12], %27 {strides = array<i32>} : memref<16x32xf32, #tpu.memory_space<vmem>>, vector<2x32xf32>,
    %29 = vector.extract_strided_slice %5 {offsets = [2, 0], sizes = [2, 128], strides = [1, 1]} : vector<16x128xf32> to vector<2x128xf32>
    %cst_13 = arith.constant dense<0.000000e+00> : vector<2x128xf32>
    %30 = tpu.matmul %27, %6, %cst_13 {dimension_numbers = #tpu.dot_dimension_numbers<[1], [0], [0], [1], [0, 0, 1, 1], [], []>} : vector<2x32xf32>, vector<32x128xf32>, vector<2x128xf32> -> vector<2x128xf32>
    %31 = arith.addf %29, %30 : vector<2x128xf32>
    %32 = vector.extract_strided_slice %31 {offsets = [0, 0], sizes = [2, 96], strides = [1, 1]} : vector<2x128xf32> to vector<2x96xf32>
    %33 = arith.negf %32 : vector<2x96xf32>
    %34 = math.exp %33 : vector<2x96xf32>
    %cst_14 = arith.constant 1.000000e+00 : f32
    %35 = vector.broadcast %cst_14 : f32 to vector<2x96xf32>
    %36 = arith.addf %35, %34 : vector<2x96xf32>
    %37 = arith.divf %35, %36 : vector<2x96xf32>
    %38 = vector.extract_strided_slice %31 {offsets = [0, 96], sizes = [2, 32], strides = [1, 1]} : vector<2x128xf32> to vector<2x32xf32>
    %39 = math.tanh %38 : vector<2x32xf32>
    %40 = vector.extract_strided_slice %37 {offsets = [0, 32], sizes = [2, 32], strides = [1, 1]} : vector<2x96xf32> to vector<2x32xf32>
    %41 = arith.mulf %40, %24 : vector<2x32xf32>
    %42 = vector.extract_strided_slice %37 {offsets = [0, 0], sizes = [2, 32], strides = [1, 1]} : vector<2x96xf32> to vector<2x32xf32>
    %43 = arith.mulf %42, %39 : vector<2x32xf32>
    %44 = arith.addf %41, %43 : vector<2x32xf32>
    %45 = vector.extract_strided_slice %37 {offsets = [0, 64], sizes = [2, 32], strides = [1, 1]} : vector<2x96xf32> to vector<2x32xf32>
    %46 = math.tanh %44 : vector<2x32xf32>
    %47 = arith.mulf %45, %46 : vector<2x32xf32>
    %c2 = arith.constant 2 : index
    %c0_15 = arith.constant 0 : index
    %48 = vector.load %arg11[%c2, %c0_15] : memref<16x32xf32, #tpu.memory_space<vmem>>, vector<2x32xf32>
    tpu.vector_store %arg11[%c2, %c0_15], %47 {strides = array<i32>} : memref<16x32xf32, #tpu.memory_space<vmem>>, vector<2x32xf32>,
    %49 = vector.extract_strided_slice %5 {offsets = [4, 0], sizes = [2, 128], strides = [1, 1]} : vector<16x128xf32> to vector<2x128xf32>
    %cst_16 = arith.constant dense<0.000000e+00> : vector<2x128xf32>
    %50 = tpu.matmul %47, %6, %cst_16 {dimension_numbers = #tpu.dot_dimension_numbers<[1], [0], [0], [1], [0, 0, 1, 1], [], []>} : vector<2x32xf32>, vector<32x128xf32>, vector<2x128xf32> -> vector<2x128xf32>
    %51 = arith.addf %49, %50 : vector<2x128xf32>
    %52 = vector.extract_strided_slice %51 {offsets = [0, 0], sizes = [2, 96], strides = [1, 1]} : vector<2x128xf32> to vector<2x96xf32>
    %53 = arith.negf %52 : vector<2x96xf32>
    %54 = math.exp %53 : vector<2x96xf32>
    %cst_17 = arith.constant 1.000000e+00 : f32
    %55 = vector.broadcast %cst_17 : f32 to vector<2x96xf32>
    %56 = arith.addf %55, %54 : vector<2x96xf32>
    %57 = arith.divf %55, %56 : vector<2x96xf32>
    %58 = vector.extract_strided_slice %51 {offsets = [0, 96], sizes = [2, 32], strides = [1, 1]} : vector<2x128xf32> to vector<2x32xf32>
    %59 = math.tanh %58 : vector<2x32xf32>
    %60 = vector.extract_strided_slice %57 {offsets = [0, 32], sizes = [2, 32], strides = [1, 1]} : vector<2x96xf32> to vector<2x32xf32>
    %61 = arith.mulf %60, %44 : vector<2x32xf32>
    %62 = vector.extract_strided_slice %57 {offsets = [0, 0], sizes = [2, 32], strides = [1, 1]} : vector<2x96xf32> to vector<2x32xf32>
    %63 = arith.mulf %62, %59 : vector<2x32xf32>
    %64 = arith.addf %61, %63 : vector<2x32xf32>
    %65 = vector.extract_strided_slice %57 {offsets = [0, 64], sizes = [2, 32], strides = [1, 1]} : vector<2x96xf32> to vector<2x32xf32>
    %66 = math.tanh %64 : vector<2x32xf32>
    %67 = arith.mulf %65, %66 : vector<2x32xf32>
    %c4 = arith.constant 4 : index
    %c0_18 = arith.constant 0 : index
    %68 = vector.load %arg11[%c4, %c0_18] : memref<16x32xf32, #tpu.memory_space<vmem>>, vector<2x32xf32>
    tpu.vector_store %arg11[%c4, %c0_18], %67 {strides = array<i32>} : memref<16x32xf32, #tpu.memory_space<vmem>>, vector<2x32xf32>,
    %69 = vector.extract_strided_slice %5 {offsets = [6, 0], sizes = [2, 128], strides = [1, 1]} : vector<16x128xf32> to vector<2x128xf32>
    %cst_19 = arith.constant dense<0.000000e+00> : vector<2x128xf32>
    %70 = tpu.matmul %67, %6, %cst_19 {dimension_numbers = #tpu.dot_dimension_numbers<[1], [0], [0], [1], [0, 0, 1, 1], [], []>} : vector<2x32xf32>, vector<32x128xf32>, vector<2x128xf32> -> vector<2x128xf32>
    %71 = arith.addf %69, %70 : vector<2x128xf32>
    %72 = vector.extract_strided_slice %71 {offsets = [0, 0], sizes = [2, 96], strides = [1, 1]} : vector<2x128xf32> to vector<2x96xf32>
    %73 = arith.negf %72 : vector<2x96xf32>
    %74 = math.exp %73 : vector<2x96xf32>
    %cst_20 = arith.constant 1.000000e+00 : f32
    %75 = vector.broadcast %cst_20 : f32 to vector<2x96xf32>
    %76 = arith.addf %75, %74 : vector<2x96xf32>
    %77 = arith.divf %75, %76 : vector<2x96xf32>
    %78 = vector.extract_strided_slice %71 {offsets = [0, 96], sizes = [2, 32], strides = [1, 1]} : vector<2x128xf32> to vector<2x32xf32>
    %79 = math.tanh %78 : vector<2x32xf32>
    %80 = vector.extract_strided_slice %77 {offsets = [0, 32], sizes = [2, 32], strides = [1, 1]} : vector<2x96xf32> to vector<2x32xf32>
    %81 = arith.mulf %80, %64 : vector<2x32xf32>
    %82 = vector.extract_strided_slice %77 {offsets = [0, 0], sizes = [2, 32], strides = [1, 1]} : vector<2x96xf32> to vector<2x32xf32>
    %83 = arith.mulf %82, %79 : vector<2x32xf32>
    %84 = arith.addf %81, %83 : vector<2x32xf32>
    %85 = vector.extract_strided_slice %77 {offsets = [0, 64], sizes = [2, 32], strides = [1, 1]} : vector<2x96xf32> to vector<2x32xf32>
    %86 = math.tanh %84 : vector<2x32xf32>
    %87 = arith.mulf %85, %86 : vector<2x32xf32>
    %c6 = arith.constant 6 : index
    %c0_21 = arith.constant 0 : index
    %88 = vector.load %arg11[%c6, %c0_21] : memref<16x32xf32, #tpu.memory_space<vmem>>, vector<2x32xf32>
    tpu.vector_store %arg11[%c6, %c0_21], %87 {strides = array<i32>} : memref<16x32xf32, #tpu.memory_space<vmem>>, vector<2x32xf32>,
    %89 = vector.extract_strided_slice %5 {offsets = [8, 0], sizes = [2, 128], strides = [1, 1]} : vector<16x128xf32> to vector<2x128xf32>
    %cst_22 = arith.constant dense<0.000000e+00> : vector<2x128xf32>
    %90 = tpu.matmul %87, %6, %cst_22 {dimension_numbers = #tpu.dot_dimension_numbers<[1], [0], [0], [1], [0, 0, 1, 1], [], []>} : vector<2x32xf32>, vector<32x128xf32>, vector<2x128xf32> -> vector<2x128xf32>
    %91 = arith.addf %89, %90 : vector<2x128xf32>
    %92 = vector.extract_strided_slice %91 {offsets = [0, 0], sizes = [2, 96], strides = [1, 1]} : vector<2x128xf32> to vector<2x96xf32>
    %93 = arith.negf %92 : vector<2x96xf32>
    %94 = math.exp %93 : vector<2x96xf32>
    %cst_23 = arith.constant 1.000000e+00 : f32
    %95 = vector.broadcast %cst_23 : f32 to vector<2x96xf32>
    %96 = arith.addf %95, %94 : vector<2x96xf32>
    %97 = arith.divf %95, %96 : vector<2x96xf32>
    %98 = vector.extract_strided_slice %91 {offsets = [0, 96], sizes = [2, 32], strides = [1, 1]} : vector<2x128xf32> to vector<2x32xf32>
    %99 = math.tanh %98 : vector<2x32xf32>
    %100 = vector.extract_strided_slice %97 {offsets = [0, 32], sizes = [2, 32], strides = [1, 1]} : vector<2x96xf32> to vector<2x32xf32>
    %101 = arith.mulf %100, %84 : vector<2x32xf32>
    %102 = vector.extract_strided_slice %97 {offsets = [0, 0], sizes = [2, 32], strides = [1, 1]} : vector<2x96xf32> to vector<2x32xf32>
    %103 = arith.mulf %102, %99 : vector<2x32xf32>
    %104 = arith.addf %101, %103 : vector<2x32xf32>
    %105 = vector.extract_strided_slice %97 {offsets = [0, 64], sizes = [2, 32], strides = [1, 1]} : vector<2x96xf32> to vector<2x32xf32>
    %106 = math.tanh %104 : vector<2x32xf32>
    %107 = arith.mulf %105, %106 : vector<2x32xf32>
    %c8 = arith.constant 8 : index
    %c0_24 = arith.constant 0 : index
    %108 = vector.load %arg11[%c8, %c0_24] : memref<16x32xf32, #tpu.memory_space<vmem>>, vector<2x32xf32>
    tpu.vector_store %arg11[%c8, %c0_24], %107 {strides = array<i32>} : memref<16x32xf32, #tpu.memory_space<vmem>>, vector<2x32xf32>,
    %109 = vector.extract_strided_slice %5 {offsets = [10, 0], sizes = [2, 128], strides = [1, 1]} : vector<16x128xf32> to vector<2x128xf32>
    %cst_25 = arith.constant dense<0.000000e+00> : vector<2x128xf32>
    %110 = tpu.matmul %107, %6, %cst_25 {dimension_numbers = #tpu.dot_dimension_numbers<[1], [0], [0], [1], [0, 0, 1, 1], [], []>} : vector<2x32xf32>, vector<32x128xf32>, vector<2x128xf32> -> vector<2x128xf32>
    %111 = arith.addf %109, %110 : vector<2x128xf32>
    %112 = vector.extract_strided_slice %111 {offsets = [0, 0], sizes = [2, 96], strides = [1, 1]} : vector<2x128xf32> to vector<2x96xf32>
    %113 = arith.negf %112 : vector<2x96xf32>
    %114 = math.exp %113 : vector<2x96xf32>
    %cst_26 = arith.constant 1.000000e+00 : f32
    %115 = vector.broadcast %cst_26 : f32 to vector<2x96xf32>
    %116 = arith.addf %115, %114 : vector<2x96xf32>
    %117 = arith.divf %115, %116 : vector<2x96xf32>
    %118 = vector.extract_strided_slice %111 {offsets = [0, 96], sizes = [2, 32], strides = [1, 1]} : vector<2x128xf32> to vector<2x32xf32>
    %119 = math.tanh %118 : vector<2x32xf32>
    %120 = vector.extract_strided_slice %117 {offsets = [0, 32], sizes = [2, 32], strides = [1, 1]} : vector<2x96xf32> to vector<2x32xf32>
    %121 = arith.mulf %120, %104 : vector<2x32xf32>
    %122 = vector.extract_strided_slice %117 {offsets = [0, 0], sizes = [2, 32], strides = [1, 1]} : vector<2x96xf32> to vector<2x32xf32>
    %123 = arith.mulf %122, %119 : vector<2x32xf32>
    %124 = arith.addf %121, %123 : vector<2x32xf32>
    %125 = vector.extract_strided_slice %117 {offsets = [0, 64], sizes = [2, 32], strides = [1, 1]} : vector<2x96xf32> to vector<2x32xf32>
    %126 = math.tanh %124 : vector<2x32xf32>
    %127 = arith.mulf %125, %126 : vector<2x32xf32>
    %c10 = arith.constant 10 : index
    %c0_27 = arith.constant 0 : index
    %128 = vector.load %arg11[%c10, %c0_27] : memref<16x32xf32, #tpu.memory_space<vmem>>, vector<2x32xf32>
    tpu.vector_store %arg11[%c10, %c0_27], %127 {strides = array<i32>} : memref<16x32xf32, #tpu.memory_space<vmem>>, vector<2x32xf32>,
    %129 = vector.extract_strided_slice %5 {offsets = [12, 0], sizes = [2, 128], strides = [1, 1]} : vector<16x128xf32> to vector<2x128xf32>
    %cst_28 = arith.constant dense<0.000000e+00> : vector<2x128xf32>
    %130 = tpu.matmul %127, %6, %cst_28 {dimension_numbers = #tpu.dot_dimension_numbers<[1], [0], [0], [1], [0, 0, 1, 1], [], []>} : vector<2x32xf32>, vector<32x128xf32>, vector<2x128xf32> -> vector<2x128xf32>
    %131 = arith.addf %129, %130 : vector<2x128xf32>
    %132 = vector.extract_strided_slice %131 {offsets = [0, 0], sizes = [2, 96], strides = [1, 1]} : vector<2x128xf32> to vector<2x96xf32>
    %133 = arith.negf %132 : vector<2x96xf32>
    %134 = math.exp %133 : vector<2x96xf32>
    %cst_29 = arith.constant 1.000000e+00 : f32
    %135 = vector.broadcast %cst_29 : f32 to vector<2x96xf32>
    %136 = arith.addf %135, %134 : vector<2x96xf32>
    %137 = arith.divf %135, %136 : vector<2x96xf32>
    %138 = vector.extract_strided_slice %131 {offsets = [0, 96], sizes = [2, 32], strides = [1, 1]} : vector<2x128xf32> to vector<2x32xf32>
    %139 = math.tanh %138 : vector<2x32xf32>
    %140 = vector.extract_strided_slice %137 {offsets = [0, 32], sizes = [2, 32], strides = [1, 1]} : vector<2x96xf32> to vector<2x32xf32>
    %141 = arith.mulf %140, %124 : vector<2x32xf32>
    %142 = vector.extract_strided_slice %137 {offsets = [0, 0], sizes = [2, 32], strides = [1, 1]} : vector<2x96xf32> to vector<2x32xf32>
    %143 = arith.mulf %142, %139 : vector<2x32xf32>
    %144 = arith.addf %141, %143 : vector<2x32xf32>
    %145 = vector.extract_strided_slice %137 {offsets = [0, 64], sizes = [2, 32], strides = [1, 1]} : vector<2x96xf32> to vector<2x32xf32>
    %146 = math.tanh %144 : vector<2x32xf32>
    %147 = arith.mulf %145, %146 : vector<2x32xf32>
    %c12 = arith.constant 12 : index
    %c0_30 = arith.constant 0 : index
    %148 = vector.load %arg11[%c12, %c0_30] : memref<16x32xf32, #tpu.memory_space<vmem>>, vector<2x32xf32>
    tpu.vector_store %arg11[%c12, %c0_30], %147 {strides = array<i32>} : memref<16x32xf32, #tpu.memory_space<vmem>>, vector<2x32xf32>,
    %149 = vector.extract_strided_slice %5 {offsets = [14, 0], sizes = [2, 128], strides = [1, 1]} : vector<16x128xf32> to vector<2x128xf32>
    %cst_31 = arith.constant dense<0.000000e+00> : vector<2x128xf32>
    %150 = tpu.matmul %147, %6, %cst_31 {dimension_numbers = #tpu.dot_dimension_numbers<[1], [0], [0], [1], [0, 0, 1, 1], [], []>} : vector<2x32xf32>, vector<32x128xf32>, vector<2x128xf32> -> vector<2x128xf32>
    %151 = arith.addf %149, %150 : vector<2x128xf32>
    %152 = vector.extract_strided_slice %151 {offsets = [0, 0], sizes = [2, 96], strides = [1, 1]} : vector<2x128xf32> to vector<2x96xf32>
    %153 = arith.negf %152 : vector<2x96xf32>
    %154 = math.exp %153 : vector<2x96xf32>
    %cst_32 = arith.constant 1.000000e+00 : f32
    %155 = vector.broadcast %cst_32 : f32 to vector<2x96xf32>
    %156 = arith.addf %155, %154 : vector<2x96xf32>
    %157 = arith.divf %155, %156 : vector<2x96xf32>
    %158 = vector.extract_strided_slice %151 {offsets = [0, 96], sizes = [2, 32], strides = [1, 1]} : vector<2x128xf32> to vector<2x32xf32>
    %159 = math.tanh %158 : vector<2x32xf32>
    %160 = vector.extract_strided_slice %157 {offsets = [0, 32], sizes = [2, 32], strides = [1, 1]} : vector<2x96xf32> to vector<2x32xf32>
    %161 = arith.mulf %160, %144 : vector<2x32xf32>
    %162 = vector.extract_strided_slice %157 {offsets = [0, 0], sizes = [2, 32], strides = [1, 1]} : vector<2x96xf32> to vector<2x32xf32>
    %163 = arith.mulf %162, %159 : vector<2x32xf32>
    %164 = arith.addf %161, %163 : vector<2x32xf32>
    %165 = vector.extract_strided_slice %157 {offsets = [0, 64], sizes = [2, 32], strides = [1, 1]} : vector<2x96xf32> to vector<2x32xf32>
    %166 = math.tanh %164 : vector<2x32xf32>
    %167 = arith.mulf %165, %166 : vector<2x32xf32>
    %c14 = arith.constant 14 : index
    %c0_33 = arith.constant 0 : index
    %168 = vector.load %arg11[%c14, %c0_33] : memref<16x32xf32, #tpu.memory_space<vmem>>, vector<2x32xf32>
    tpu.vector_store %arg11[%c14, %c0_33], %167 {strides = array<i32>} : memref<16x32xf32, #tpu.memory_space<vmem>>, vector<2x32xf32>,
    %c0_34 = arith.constant 0 : index
    %c0_35 = arith.constant 0 : index
    %169 = vector.load %arg13[%c0_34, %c0_35] : memref<2x64xf32, #tpu.memory_space<vmem>>, vector<2x32xf32>
    tpu.vector_store %arg13[%c0_34, %c0_35], %164 {strides = array<i32>} : memref<2x64xf32, #tpu.memory_space<vmem>>, vector<2x32xf32>,
    %c0_36 = arith.constant 0 : index
    %c0_37 = arith.constant 0 : index
    %170 = vector.load %arg11[%c0_36, %c0_37] : memref<16x32xf32, #tpu.memory_space<vmem>>, vector<16x32xf32>
    %c0_38 = arith.constant 0 : index
    %c0_39 = arith.constant 0 : index
    %171 = vector.load %arg4[%c0_38, %c0_39] : memref<32x128xf32, #tpu.memory_space<vmem>>, vector<32x128xf32>
    %cst_40 = arith.constant dense<0.000000e+00> : vector<16x128xf32>
    %172 = tpu.matmul %170, %171, %cst_40 {dimension_numbers = #tpu.dot_dimension_numbers<[1], [0], [0], [1], [0, 0, 1, 1], [], []>} : vector<16x32xf32>, vector<32x128xf32>, vector<16x128xf32> -> vector<16x128xf32>
    %c0_41 = arith.constant 0 : index
    %c0_42 = arith.constant 0 : index
    %173 = vector.load %arg6[%c0_41, %c0_42] : memref<1x128xf32, #tpu.memory_space<vmem>>, vector<1x128xf32>
    %174 = vector.broadcast %173 : vector<1x128xf32> to vector<16x128xf32>
    %175 = arith.addf %172, %174 : vector<16x128xf32>
    %c0_43 = arith.constant 0 : index
    %c0_44 = arith.constant 0 : index
    %176 = vector.load %arg5[%c0_43, %c0_44] : memref<32x128xf32, #tpu.memory_space<vmem>>, vector<32x128xf32>
    %cst_45 = arith.constant 0.000000e+00 : f32
    %177 = vector.broadcast %cst_45 : f32 to vector<2x32xf32>
    %cst_46 = arith.constant 0.000000e+00 : f32
    %178 = vector.broadcast %cst_46 : f32 to vector<2x32xf32>
    %179 = vector.extract_strided_slice %175 {offsets = [0, 0], sizes = [2, 128], strides = [1, 1]} : vector<16x128xf32> to vector<2x128xf32>
    %cst_47 = arith.constant dense<0.000000e+00> : vector<2x128xf32>
    %180 = tpu.matmul %177, %176, %cst_47 {dimension_numbers = #tpu.dot_dimension_numbers<[1], [0], [0], [1], [0, 0, 1, 1], [], []>} : vector<2x32xf32>, vector<32x128xf32>, vector<2x128xf32> -> vector<2x128xf32>
    %181 = arith.addf %179, %180 : vector<2x128xf32>
    %182 = vector.extract_strided_slice %181 {offsets = [0, 0], sizes = [2, 96], strides = [1, 1]} : vector<2x128xf32> to vector<2x96xf32>
    %183 = arith.negf %182 : vector<2x96xf32>
    %184 = math.exp %183 : vector<2x96xf32>
    %cst_48 = arith.constant 1.000000e+00 : f32
    %185 = vector.broadcast %cst_48 : f32 to vector<2x96xf32>
    %186 = arith.addf %185, %184 : vector<2x96xf32>
    %187 = arith.divf %185, %186 : vector<2x96xf32>
    %188 = vector.extract_strided_slice %181 {offsets = [0, 96], sizes = [2, 32], strides = [1, 1]} : vector<2x128xf32> to vector<2x32xf32>
    %189 = math.tanh %188 : vector<2x32xf32>
    %190 = vector.extract_strided_slice %187 {offsets = [0, 32], sizes = [2, 32], strides = [1, 1]} : vector<2x96xf32> to vector<2x32xf32>
    %191 = arith.mulf %190, %178 : vector<2x32xf32>
    %192 = vector.extract_strided_slice %187 {offsets = [0, 0], sizes = [2, 32], strides = [1, 1]} : vector<2x96xf32> to vector<2x32xf32>
    %193 = arith.mulf %192, %189 : vector<2x32xf32>
    %194 = arith.addf %191, %193 : vector<2x32xf32>
    %195 = vector.extract_strided_slice %187 {offsets = [0, 64], sizes = [2, 32], strides = [1, 1]} : vector<2x96xf32> to vector<2x32xf32>
    %196 = math.tanh %194 : vector<2x32xf32>
    %197 = arith.mulf %195, %196 : vector<2x32xf32>
    %198 = vector.extract_strided_slice %175 {offsets = [2, 0], sizes = [2, 128], strides = [1, 1]} : vector<16x128xf32> to vector<2x128xf32>
    %cst_49 = arith.constant dense<0.000000e+00> : vector<2x128xf32>
    %199 = tpu.matmul %197, %176, %cst_49 {dimension_numbers = #tpu.dot_dimension_numbers<[1], [0], [0], [1], [0, 0, 1, 1], [], []>} : vector<2x32xf32>, vector<32x128xf32>, vector<2x128xf32> -> vector<2x128xf32>
    %200 = arith.addf %198, %199 : vector<2x128xf32>
    %201 = vector.extract_strided_slice %200 {offsets = [0, 0], sizes = [2, 96], strides = [1, 1]} : vector<2x128xf32> to vector<2x96xf32>
    %202 = arith.negf %201 : vector<2x96xf32>
    %203 = math.exp %202 : vector<2x96xf32>
    %cst_50 = arith.constant 1.000000e+00 : f32
    %204 = vector.broadcast %cst_50 : f32 to vector<2x96xf32>
    %205 = arith.addf %204, %203 : vector<2x96xf32>
    %206 = arith.divf %204, %205 : vector<2x96xf32>
    %207 = vector.extract_strided_slice %200 {offsets = [0, 96], sizes = [2, 32], strides = [1, 1]} : vector<2x128xf32> to vector<2x32xf32>
    %208 = math.tanh %207 : vector<2x32xf32>
    %209 = vector.extract_strided_slice %206 {offsets = [0, 32], sizes = [2, 32], strides = [1, 1]} : vector<2x96xf32> to vector<2x32xf32>
    %210 = arith.mulf %209, %194 : vector<2x32xf32>
    %211 = vector.extract_strided_slice %206 {offsets = [0, 0], sizes = [2, 32], strides = [1, 1]} : vector<2x96xf32> to vector<2x32xf32>
    %212 = arith.mulf %211, %208 : vector<2x32xf32>
    %213 = arith.addf %210, %212 : vector<2x32xf32>
    %214 = vector.extract_strided_slice %206 {offsets = [0, 64], sizes = [2, 32], strides = [1, 1]} : vector<2x96xf32> to vector<2x32xf32>
    %215 = math.tanh %213 : vector<2x32xf32>
    %216 = arith.mulf %214, %215 : vector<2x32xf32>
    %217 = vector.extract_strided_slice %175 {offsets = [4, 0], sizes = [2, 128], strides = [1, 1]} : vector<16x128xf32> to vector<2x128xf32>
    %cst_51 = arith.constant dense<0.000000e+00> : vector<2x128xf32>
    %218 = tpu.matmul %216, %176, %cst_51 {dimension_numbers = #tpu.dot_dimension_numbers<[1], [0], [0], [1], [0, 0, 1, 1], [], []>} : vector<2x32xf32>, vector<32x128xf32>, vector<2x128xf32> -> vector<2x128xf32>
    %219 = arith.addf %217, %218 : vector<2x128xf32>
    %220 = vector.extract_strided_slice %219 {offsets = [0, 0], sizes = [2, 96], strides = [1, 1]} : vector<2x128xf32> to vector<2x96xf32>
    %221 = arith.negf %220 : vector<2x96xf32>
    %222 = math.exp %221 : vector<2x96xf32>
    %cst_52 = arith.constant 1.000000e+00 : f32
    %223 = vector.broadcast %cst_52 : f32 to vector<2x96xf32>
    %224 = arith.addf %223, %222 : vector<2x96xf32>
    %225 = arith.divf %223, %224 : vector<2x96xf32>
    %226 = vector.extract_strided_slice %219 {offsets = [0, 96], sizes = [2, 32], strides = [1, 1]} : vector<2x128xf32> to vector<2x32xf32>
    %227 = math.tanh %226 : vector<2x32xf32>
    %228 = vector.extract_strided_slice %225 {offsets = [0, 32], sizes = [2, 32], strides = [1, 1]} : vector<2x96xf32> to vector<2x32xf32>
    %229 = arith.mulf %228, %213 : vector<2x32xf32>
    %230 = vector.extract_strided_slice %225 {offsets = [0, 0], sizes = [2, 32], strides = [1, 1]} : vector<2x96xf32> to vector<2x32xf32>
    %231 = arith.mulf %230, %227 : vector<2x32xf32>
    %232 = arith.addf %229, %231 : vector<2x32xf32>
    %233 = vector.extract_strided_slice %225 {offsets = [0, 64], sizes = [2, 32], strides = [1, 1]} : vector<2x96xf32> to vector<2x32xf32>
    %234 = math.tanh %232 : vector<2x32xf32>
    %235 = arith.mulf %233, %234 : vector<2x32xf32>
    %236 = vector.extract_strided_slice %175 {offsets = [6, 0], sizes = [2, 128], strides = [1, 1]} : vector<16x128xf32> to vector<2x128xf32>
    %cst_53 = arith.constant dense<0.000000e+00> : vector<2x128xf32>
    %237 = tpu.matmul %235, %176, %cst_53 {dimension_numbers = #tpu.dot_dimension_numbers<[1], [0], [0], [1], [0, 0, 1, 1], [], []>} : vector<2x32xf32>, vector<32x128xf32>, vector<2x128xf32> -> vector<2x128xf32>
    %238 = arith.addf %236, %237 : vector<2x128xf32>
    %239 = vector.extract_strided_slice %238 {offsets = [0, 0], sizes = [2, 96], strides = [1, 1]} : vector<2x128xf32> to vector<2x96xf32>
    %240 = arith.negf %239 : vector<2x96xf32>
    %241 = math.exp %240 : vector<2x96xf32>
    %cst_54 = arith.constant 1.000000e+00 : f32
    %242 = vector.broadcast %cst_54 : f32 to vector<2x96xf32>
    %243 = arith.addf %242, %241 : vector<2x96xf32>
    %244 = arith.divf %242, %243 : vector<2x96xf32>
    %245 = vector.extract_strided_slice %238 {offsets = [0, 96], sizes = [2, 32], strides = [1, 1]} : vector<2x128xf32> to vector<2x32xf32>
    %246 = math.tanh %245 : vector<2x32xf32>
    %247 = vector.extract_strided_slice %244 {offsets = [0, 32], sizes = [2, 32], strides = [1, 1]} : vector<2x96xf32> to vector<2x32xf32>
    %248 = arith.mulf %247, %232 : vector<2x32xf32>
    %249 = vector.extract_strided_slice %244 {offsets = [0, 0], sizes = [2, 32], strides = [1, 1]} : vector<2x96xf32> to vector<2x32xf32>
    %250 = arith.mulf %249, %246 : vector<2x32xf32>
    %251 = arith.addf %248, %250 : vector<2x32xf32>
    %252 = vector.extract_strided_slice %244 {offsets = [0, 64], sizes = [2, 32], strides = [1, 1]} : vector<2x96xf32> to vector<2x32xf32>
    %253 = math.tanh %251 : vector<2x32xf32>
    %254 = arith.mulf %252, %253 : vector<2x32xf32>
    %255 = vector.extract_strided_slice %175 {offsets = [8, 0], sizes = [2, 128], strides = [1, 1]} : vector<16x128xf32> to vector<2x128xf32>
    %cst_55 = arith.constant dense<0.000000e+00> : vector<2x128xf32>
    %256 = tpu.matmul %254, %176, %cst_55 {dimension_numbers = #tpu.dot_dimension_numbers<[1], [0], [0], [1], [0, 0, 1, 1], [], []>} : vector<2x32xf32>, vector<32x128xf32>, vector<2x128xf32> -> vector<2x128xf32>
    %257 = arith.addf %255, %256 : vector<2x128xf32>
    %258 = vector.extract_strided_slice %257 {offsets = [0, 0], sizes = [2, 96], strides = [1, 1]} : vector<2x128xf32> to vector<2x96xf32>
    %259 = arith.negf %258 : vector<2x96xf32>
    %260 = math.exp %259 : vector<2x96xf32>
    %cst_56 = arith.constant 1.000000e+00 : f32
    %261 = vector.broadcast %cst_56 : f32 to vector<2x96xf32>
    %262 = arith.addf %261, %260 : vector<2x96xf32>
    %263 = arith.divf %261, %262 : vector<2x96xf32>
    %264 = vector.extract_strided_slice %257 {offsets = [0, 96], sizes = [2, 32], strides = [1, 1]} : vector<2x128xf32> to vector<2x32xf32>
    %265 = math.tanh %264 : vector<2x32xf32>
    %266 = vector.extract_strided_slice %263 {offsets = [0, 32], sizes = [2, 32], strides = [1, 1]} : vector<2x96xf32> to vector<2x32xf32>
    %267 = arith.mulf %266, %251 : vector<2x32xf32>
    %268 = vector.extract_strided_slice %263 {offsets = [0, 0], sizes = [2, 32], strides = [1, 1]} : vector<2x96xf32> to vector<2x32xf32>
    %269 = arith.mulf %268, %265 : vector<2x32xf32>
    %270 = arith.addf %267, %269 : vector<2x32xf32>
    %271 = vector.extract_strided_slice %263 {offsets = [0, 64], sizes = [2, 32], strides = [1, 1]} : vector<2x96xf32> to vector<2x32xf32>
    %272 = math.tanh %270 : vector<2x32xf32>
    %273 = arith.mulf %271, %272 : vector<2x32xf32>
    %274 = vector.extract_strided_slice %175 {offsets = [10, 0], sizes = [2, 128], strides = [1, 1]} : vector<16x128xf32> to vector<2x128xf32>
    %cst_57 = arith.constant dense<0.000000e+00> : vector<2x128xf32>
    %275 = tpu.matmul %273, %176, %cst_57 {dimension_numbers = #tpu.dot_dimension_numbers<[1], [0], [0], [1], [0, 0, 1, 1], [], []>} : vector<2x32xf32>, vector<32x128xf32>, vector<2x128xf32> -> vector<2x128xf32>
    %276 = arith.addf %274, %275 : vector<2x128xf32>
    %277 = vector.extract_strided_slice %276 {offsets = [0, 0], sizes = [2, 96], strides = [1, 1]} : vector<2x128xf32> to vector<2x96xf32>
    %278 = arith.negf %277 : vector<2x96xf32>
    %279 = math.exp %278 : vector<2x96xf32>
    %cst_58 = arith.constant 1.000000e+00 : f32
    %280 = vector.broadcast %cst_58 : f32 to vector<2x96xf32>
    %281 = arith.addf %280, %279 : vector<2x96xf32>
    %282 = arith.divf %280, %281 : vector<2x96xf32>
    %283 = vector.extract_strided_slice %276 {offsets = [0, 96], sizes = [2, 32], strides = [1, 1]} : vector<2x128xf32> to vector<2x32xf32>
    %284 = math.tanh %283 : vector<2x32xf32>
    %285 = vector.extract_strided_slice %282 {offsets = [0, 32], sizes = [2, 32], strides = [1, 1]} : vector<2x96xf32> to vector<2x32xf32>
    %286 = arith.mulf %285, %270 : vector<2x32xf32>
    %287 = vector.extract_strided_slice %282 {offsets = [0, 0], sizes = [2, 32], strides = [1, 1]} : vector<2x96xf32> to vector<2x32xf32>
    %288 = arith.mulf %287, %284 : vector<2x32xf32>
    %289 = arith.addf %286, %288 : vector<2x32xf32>
    %290 = vector.extract_strided_slice %282 {offsets = [0, 64], sizes = [2, 32], strides = [1, 1]} : vector<2x96xf32> to vector<2x32xf32>
    %291 = math.tanh %289 : vector<2x32xf32>
    %292 = arith.mulf %290, %291 : vector<2x32xf32>
    %293 = vector.extract_strided_slice %175 {offsets = [12, 0], sizes = [2, 128], strides = [1, 1]} : vector<16x128xf32> to vector<2x128xf32>
    %cst_59 = arith.constant dense<0.000000e+00> : vector<2x128xf32>
    %294 = tpu.matmul %292, %176, %cst_59 {dimension_numbers = #tpu.dot_dimension_numbers<[1], [0], [0], [1], [0, 0, 1, 1], [], []>} : vector<2x32xf32>, vector<32x128xf32>, vector<2x128xf32> -> vector<2x128xf32>
    %295 = arith.addf %293, %294 : vector<2x128xf32>
    %296 = vector.extract_strided_slice %295 {offsets = [0, 0], sizes = [2, 96], strides = [1, 1]} : vector<2x128xf32> to vector<2x96xf32>
    %297 = arith.negf %296 : vector<2x96xf32>
    %298 = math.exp %297 : vector<2x96xf32>
    %cst_60 = arith.constant 1.000000e+00 : f32
    %299 = vector.broadcast %cst_60 : f32 to vector<2x96xf32>
    %300 = arith.addf %299, %298 : vector<2x96xf32>
    %301 = arith.divf %299, %300 : vector<2x96xf32>
    %302 = vector.extract_strided_slice %295 {offsets = [0, 96], sizes = [2, 32], strides = [1, 1]} : vector<2x128xf32> to vector<2x32xf32>
    %303 = math.tanh %302 : vector<2x32xf32>
    %304 = vector.extract_strided_slice %301 {offsets = [0, 32], sizes = [2, 32], strides = [1, 1]} : vector<2x96xf32> to vector<2x32xf32>
    %305 = arith.mulf %304, %289 : vector<2x32xf32>
    %306 = vector.extract_strided_slice %301 {offsets = [0, 0], sizes = [2, 32], strides = [1, 1]} : vector<2x96xf32> to vector<2x32xf32>
    %307 = arith.mulf %306, %303 : vector<2x32xf32>
    %308 = arith.addf %305, %307 : vector<2x32xf32>
    %309 = vector.extract_strided_slice %301 {offsets = [0, 64], sizes = [2, 32], strides = [1, 1]} : vector<2x96xf32> to vector<2x32xf32>
    %310 = math.tanh %308 : vector<2x32xf32>
    %311 = arith.mulf %309, %310 : vector<2x32xf32>
    %312 = vector.extract_strided_slice %175 {offsets = [14, 0], sizes = [2, 128], strides = [1, 1]} : vector<16x128xf32> to vector<2x128xf32>
    %cst_61 = arith.constant dense<0.000000e+00> : vector<2x128xf32>
    %313 = tpu.matmul %311, %176, %cst_61 {dimension_numbers = #tpu.dot_dimension_numbers<[1], [0], [0], [1], [0, 0, 1, 1], [], []>} : vector<2x32xf32>, vector<32x128xf32>, vector<2x128xf32> -> vector<2x128xf32>
    %314 = arith.addf %312, %313 : vector<2x128xf32>
    %315 = vector.extract_strided_slice %314 {offsets = [0, 0], sizes = [2, 96], strides = [1, 1]} : vector<2x128xf32> to vector<2x96xf32>
    %316 = arith.negf %315 : vector<2x96xf32>
    %317 = math.exp %316 : vector<2x96xf32>
    %cst_62 = arith.constant 1.000000e+00 : f32
    %318 = vector.broadcast %cst_62 : f32 to vector<2x96xf32>
    %319 = arith.addf %318, %317 : vector<2x96xf32>
    %320 = arith.divf %318, %319 : vector<2x96xf32>
    %321 = vector.extract_strided_slice %314 {offsets = [0, 96], sizes = [2, 32], strides = [1, 1]} : vector<2x128xf32> to vector<2x32xf32>
    %322 = math.tanh %321 : vector<2x32xf32>
    %323 = vector.extract_strided_slice %320 {offsets = [0, 32], sizes = [2, 32], strides = [1, 1]} : vector<2x96xf32> to vector<2x32xf32>
    %324 = arith.mulf %323, %308 : vector<2x32xf32>
    %325 = vector.extract_strided_slice %320 {offsets = [0, 0], sizes = [2, 32], strides = [1, 1]} : vector<2x96xf32> to vector<2x32xf32>
    %326 = arith.mulf %325, %322 : vector<2x32xf32>
    %327 = arith.addf %324, %326 : vector<2x32xf32>
    %c0_63 = arith.constant 0 : index
    %c32 = arith.constant 32 : index
    %328 = vector.load %arg13[%c0_63, %c32] : memref<2x64xf32, #tpu.memory_space<vmem>>, vector<2x32xf32>
    tpu.vector_store %arg13[%c0_63, %c32], %327 {strides = array<i32>} : memref<2x64xf32, #tpu.memory_space<vmem>>, vector<2x32xf32>,
    %c0_64 = arith.constant 0 : index
    %c0_65 = arith.constant 0 : index
    %329 = vector.load %arg13[%c0_64, %c0_65] : memref<2x64xf32, #tpu.memory_space<vmem>>, vector<2x64xf32>
    %c0_66 = arith.constant 0 : index
    %c0_67 = arith.constant 0 : index
    %330 = vector.load %arg7[%c0_66, %c0_67] : memref<64x4xf32, #tpu.memory_space<vmem>>, vector<64x4xf32>
    %cst_68 = arith.constant dense<0.000000e+00> : vector<2x4xf32>
    %331 = tpu.matmul %329, %330, %cst_68 {dimension_numbers = #tpu.dot_dimension_numbers<[1], [0], [0], [1], [0, 0, 1, 1], [], []>} : vector<2x64xf32>, vector<64x4xf32>, vector<2x4xf32> -> vector<2x4xf32>
    %cst_69 = arith.constant 0.000000e+00 : f32
    %332 = vector.broadcast %cst_69 : f32 to vector<2x4xf32>
    %333 = arith.maximumf %331, %332 : vector<2x4xf32>
    %c0_70 = arith.constant 0 : index
    %c0_71 = arith.constant 0 : index
    %334 = vector.load %arg8[%c0_70, %c0_71] : memref<4x4xf32, #tpu.memory_space<vmem>>, vector<4x4xf32>
    %cst_72 = arith.constant dense<0.000000e+00> : vector<2x4xf32>
    %335 = tpu.matmul %333, %334, %cst_72 {dimension_numbers = #tpu.dot_dimension_numbers<[1], [0], [0], [1], [0, 0, 1, 1], [], []>} : vector<2x4xf32>, vector<4x4xf32>, vector<2x4xf32> -> vector<2x4xf32>
    %cst_73 = arith.constant 0.000000e+00 : f32
    %336 = vector.broadcast %cst_73 : f32 to vector<2x4xf32>
    %337 = arith.maximumf %335, %336 : vector<2x4xf32>
    %c0_74 = arith.constant 0 : index
    %c0_75 = arith.constant 0 : index
    %338 = vector.load %arg9[%c0_74, %c0_75] : memref<4x4xf32, #tpu.memory_space<vmem>>, vector<4x4xf32>
    %cst_76 = arith.constant dense<0.000000e+00> : vector<2x4xf32>
    %339 = tpu.matmul %337, %338, %cst_76 {dimension_numbers = #tpu.dot_dimension_numbers<[1], [0], [0], [1], [0, 0, 1, 1], [], []>} : vector<2x4xf32>, vector<4x4xf32>, vector<2x4xf32> -> vector<2x4xf32>
    %c0_77 = arith.constant 0 : index
    %c0_78 = arith.constant 0 : index
    %340 = vector.load %arg10[%c0_77, %c0_78] : memref<2x4xf32, #tpu.memory_space<vmem>>, vector<2x4xf32>
    tpu.vector_store %arg10[%c0_77, %c0_78], %339 {strides = array<i32>} : memref<2x4xf32, #tpu.memory_space<vmem>>, vector<2x4xf32>,
    return
  }
}

</mosaic_0001>

<llo_original>
// kernel: tpu_custom_call.1
$region0: #{tpu_custom_call.1}
  #allocation0 [shape = 'u32[]', space=smem, size = 0x4, offset = 0x4, fixed_abs, tag = 'smem constant byte address 0x4 - core index']
  #allocation1 [shape = 'u32[72,128]{1,0:T(1,128)}', space=vmem, size = 0x9000, scoped, tag = 'internal scratch']
  #allocation2 [shape = 'f32[16,32]{1,0:T(8,128)}', space=vmem, size = 0x2000, scoped, tag = 'scratch operand']
  #allocation3 [shape = 'f32[16,32]{1,0:T(8,128)}', space=vmem, size = 0x2000, scoped, tag = 'scratch operand']
  #allocation4 [shape = 'f32[2,64]{1,0:T(2,128)}', space=vmem, size = 0x400, scoped, tag = 'scratch operand']
  %s0 = inlined_call_operand.vmem [shape: f32[16,8], index: 0, kind: input, shape index: {}]
  %s1 = inlined_call_operand.vmem [shape: f32[8,128], index: 1, kind: input, shape index: {}]
  %s2 = inlined_call_operand.vmem [shape: f32[32,128], index: 2, kind: input, shape index: {}]
  %s3 = inlined_call_operand.vmem [shape: f32[1,128], index: 3, kind: input, shape index: {}]
  %s4 = inlined_call_operand.vmem [shape: f32[32,128], index: 4, kind: input, shape index: {}]
  %s5 = inlined_call_operand.hbm [shape: f32[32,128], index: 5, kind: input, shape index: {}]
  %s6 = inlined_call_operand.vmem [shape: f32[1,128], index: 6, kind: input, shape index: {}]
  %s7 = inlined_call_operand.vmem [shape: f32[64,4], index: 7, kind: input, shape index: {}]
  %s8 = inlined_call_operand.vmem [shape: f32[4,4], index: 8, kind: input, shape index: {}]
  %s9 = inlined_call_operand.vmem [shape: f32[4,4], index: 9, kind: input, shape index: {}]
  %s10 = inlined_call_operand.hbm [shape: f32[2,4], index: 10, kind: output, shape index: {}]
  %s11 = sld [smem:[#allocation0]]
  $region54: #{tpu_custom_call.1} parent=0
    _
  %s13 = ssub.s32 1, %s11
  %s14 = scalar_select 0, %s13, %s11
  $region1: #{tpu_custom_call.1} parent=0
    #allocation5 [shape = 'u8[16384]{0}', space=vmem, size = 0x4000, scoped, tag = 'input window, operand 5, single buffered']
    #allocation6 [shape = 's32[1]{0}', space=sflag, size = 0x4, scoped, tag = 'scoped memory for tpu_custom_call.1']
    #allocation7 [shape = 's32[1]{0}', space=sflag, size = 0x4, scoped, tag = 'scoped memory for tpu_custom_call.1']
    #allocation8 [shape = 'u8[1024]{0}', space=vmem, size = 0x400, scoped, tag = 'output window, operand 0, single buffered']
    %15 = vsyncpa [#allocation6], 0
    %16 = vsyncpa [#allocation7], 0
    // Predicated region
    $region2: #{tpu_custom_call.1} parent=1 // pred_check
      _
    $region3: #{tpu_custom_call.1} parent=1 // pred_check_branch
      %18 = sbr.rel (0) target = $region5
    $region4: #{tpu_custom_call.1} parent=1 // pred_region
      _
    $region5: #{tpu_custom_call.1} parent=1 // pred_fallthru
      _
    // Predicated region
    $region6: #{tpu_custom_call.1} parent=1 // pred_check
      _
    $region7: #{tpu_custom_call.1} parent=1 // pred_check_branch
      %20 = sbr.rel (0) target = $region9
    $region8: #{tpu_custom_call.1} parent=1 // pred_region
      _
    $region9: #{tpu_custom_call.1} parent=1 // pred_fallthru
      _
    // Predicated region
    $region10: #{tpu_custom_call.1} parent=1 // pred_check
      _
    $region11: #{tpu_custom_call.1} parent=1 // pred_check_branch
      %22 = sbr.rel (0) target = $region13
    $region12: #{tpu_custom_call.1} parent=1 // pred_region
      _
    $region13: #{tpu_custom_call.1} parent=1 // pred_fallthru
      _
    // Predicated region
    $region14: #{tpu_custom_call.1} parent=1 // pred_check
      _
    $region15: #{tpu_custom_call.1} parent=1 // pred_check_branch
      %24 = sbr.rel (0) target = $region17
    $region16: #{tpu_custom_call.1} parent=1 // pred_region
      _
    $region17: #{tpu_custom_call.1} parent=1 // pred_fallthru
      _
    // Predicated region
    $region18: #{tpu_custom_call.1} parent=1 // pred_check
      _
    $region19: #{tpu_custom_call.1} parent=1 // pred_check_branch
      %26 = sbr.rel (0) target = $region21
    $region20: #{tpu_custom_call.1} parent=1 // pred_region
      _
    $region21: #{tpu_custom_call.1} parent=1 // pred_fallthru
      _
    // Predicated region
    $region22: #{tpu_custom_call.1} parent=1 // pred_check
      _
    $region23: #{tpu_custom_call.1} parent=1 // pred_check_branch
      %28 = sbr.rel (0) target = $region25
    $region24: #{tpu_custom_call.1} parent=1 // pred_region
      %30 = vsyncadd [#allocation6], 0
      %s31 = sshll.u32 %s5, 4
      %s32 = int_to_ptr.hbm [resolvable:$true] %s31
      %s33 = sshll.u32 [#allocation5], 4
      %s34 = int_to_ptr.vmem [resolvable:$true] %s33
      %39 = dma.hbm_to_vmem [thread:$0]  %s32, 512, %s34, [#allocation6], 128, 128, 8
    $region25: #{tpu_custom_call.1} parent=1 // pred_fallthru
      _
    // Predicated region
    $region26: #{tpu_custom_call.1} parent=1 // pred_check
      _
    $region27: #{tpu_custom_call.1} parent=1 // pred_check_branch
      %41 = sbr.rel (0) target = $region29
    $region28: #{tpu_custom_call.1} parent=1 // pred_region
      _
    $region29: #{tpu_custom_call.1} parent=1 // pred_fallthru
      _
    // Predicated region
    $region30: #{tpu_custom_call.1} parent=1 // pred_check
      _
    $region31: #{tpu_custom_call.1} parent=1 // pred_check_branch
      %43 = sbr.rel (0) target = $region33
    $region32: #{tpu_custom_call.1} parent=1 // pred_region
      _
    $region33: #{tpu_custom_call.1} parent=1 // pred_fallthru
      _
    // Predicated region
    $region34: #{tpu_custom_call.1} parent=1 // pred_check
      _
    $region35: #{tpu_custom_call.1} parent=1 // pred_check_branch
      %45 = sbr.rel (0) target = $region37
    $region36: #{tpu_custom_call.1} parent=1 // pred_region
      _
    $region37: #{tpu_custom_call.1} parent=1 // pred_fallthru
      _
    // Predicated region
    $region38: #{tpu_custom_call.1} parent=1 // pred_check
      _
    $region39: #{tpu_custom_call.1} parent=1 // pred_check_branch
      %47 = sbr.rel (0) target = $region41
    $region40: #{tpu_custom_call.1} parent=1 // pred_region
      _
    $region41: #{tpu_custom_call.1} parent=1 // pred_fallthru
      _
    // Predicated region
    $region42: #{tpu_custom_call.1} parent=1 // pred_check
      _
    $region43: #{tpu_custom_call.1} parent=1 // pred_check_branch
      %49 = sbr.rel (0) target = $region45
    $region44: #{tpu_custom_call.1} parent=1 // pred_region
      %51 = dma.done [#allocation6], 512
    $region45: #{tpu_custom_call.1} parent=1 // pred_fallthru
      _
    %v52 = vld [vmem:[%s0] sm:$0xff]
    %v53 = vld [vmem:[%s0 + $0x8] sm:$0xff]
    %v54 = vld [vmem:[%s1] sm:$0xff]
    %v55 = vld [vmem:[%s3] sm:$0x1]
    %v57 = vperm.slane %v55, 0
    %vm59 = vcmask 64512
    %v61 = vsel %vm59, %v52, 0
    %v64 = vsel %vm59, %v53, 0
    %66 = vmatpush.msra.mxu0 0.0
    %67 = vmatpush.msra.mxu0 0.0
    %68 = vmatpush.msra.mxu0 0.0
    %69 = vmatpush.msra.mxu0 0.0
    %70 = vmatpush.msra.mxu0 0.0
    %71 = vmatpush.msra.mxu0 0.0
    %72 = vmatpush.msra.mxu0 0.0
    %73 = vmatpush.msra.mxu0 0.0
    %74 = vmatpush.msra.mxu0 0.0
    %75 = vmatpush.msra.mxu0 0.0
    %76 = vmatpush.msra.mxu0 0.0
    %77 = vmatpush.msra.mxu0 0.0
    %78 = vmatpush.msra.mxu0 0.0
    %79 = vmatpush.msra.mxu0 0.0
    %80 = vmatpush.msra.mxu0 0.0
    %81 = vmatpush.msra.mxu0 %v54
    %82 = vmatmul.f32.gmra.mxu0 %v61
    %v83 = vpop.f32.mrf.mxu0
    %v84 = vadd.f32 %v57, %v83
    %85 = vmatmul.f32.gmra.mxu0 %v64
    %v86 = vpop.f32.mrf.mxu0
    %v87 = vadd.f32 %v57, %v86
    %88 = vdwg.mxu0
    %v89 = vld [vmem:[%s2] sm:$0xff]
    %v90 = vld [vmem:[%s2 + $0x8] sm:$0xff]
    %v91 = vld [vmem:[%s2 + $0x10] sm:$0xff]
    %v92 = vld [vmem:[%s2 + $0x18] sm:$0xff]
    %vm93 = vcmask 261120
    %v95 = vsel %vm93, 0.0, 0
    %97 = vmatpush.msra.mxu0 0.0
    %98 = vmatpush.msra.mxu0 0.0
    %99 = vmatpush.msra.mxu0 0.0
    %100 = vmatpush.msra.mxu0 0.0
    %101 = vmatpush.msra.mxu0 0.0
    %102 = vmatpush.msra.mxu0 0.0
    %103 = vmatpush.msra.mxu0 0.0
    %104 = vmatpush.msra.mxu0 0.0
    %105 = vmatpush.msra.mxu0 0.0
    %106 = vmatpush.msra.mxu0 0.0
    %107 = vmatpush.msra.mxu0 0.0
    %108 = vmatpush.msra.mxu0 0.0
    %109 = vmatpush.msra.mxu0 %v92
    %110 = vmatpush.msra.mxu0 %v91
    %111 = vmatpush.msra.mxu0 %v90
    %112 = vmatpush.msra.mxu0 %v89
    %113 = vmatmul.f32.gmra.mxu0 %v95
    %v114 = vpop.f32.mrf.mxu0
    %v115 = vadd.f32 0.0, %v114
    %116 = vdwg.mxu0
    %v117 = vadd.f32 %v84, %v115
    %v118 = vxor.u32 %v117, 2147483648
    %v119 = vmul.f32 %v118, 1.442695
    %v120 = vpow.pop %v119
    %v121 = vadd.f32 %v120, 1.0
    %v122 = vrcp.pop %v121
    %v123 = vmul.f32 %v121, %v122
    %v124 = vsub.f32 1.0, %v123
    %v125 = vmul.f32 %v122, %v124
    %v126 = vadd.f32 %v122, %v125
    %vm127 = vweird.f32 %v121
    %vm128 = vweird.f32 %v122
    %vm129 = vmor %vm127, %vm128
    %v130 = vsel %vm129, %v122, %v126
    %v131 = vand.u32 2147483647, %v121
    %vm132 = vcmp.eq.f32.partialorder %v131, 8.507059e+37
    %v133 = vand.u32 %v121, 2147483648
    %v134 = vor.u32 1.1754944e-38, %v133
    %v135 = vsel %vm132, %v134, %v130
    %v136 = vmul.f32 1.0, %v135
    %v137 = vtanh.pop %v117
    %v138 = vmul.f32 %v136, 0.0
    %140 = vrot.lane.b32.xlu0 %v137, 32
    %v141 = vpop.permute.xlu0 %140
    %v143 = vmul.f32 %v136, %v141
    %145 = vrot.lane.b32.xlu0 %v143, 32
    %v146 = vpop.permute.xlu0 %145
    %v148 = vadd.f32 %v138, %v146
    %v149 = vtanh.pop %v148
    %151 = vrot.lane.b32.xlu0 %v149, 32
    %v152 = vpop.permute.xlu0 %151
    %v154 = vmul.f32 %v136, %v152
    %156 = vrot.lane.b32.xlu0 %v154, 64
    %v157 = vpop.permute.xlu0 %156
    %vm159 = vcmask 254976
    %160 = vst.msk [vmem:[#allocation2] sm:$0x3] %vm159, %v157
    %v161 = vsel %vm93, %v157, 0
    %163 = vmatpush.msra.mxu0 0.0
    %164 = vmatpush.msra.mxu0 0.0
    %165 = vmatpush.msra.mxu0 0.0
    %166 = vmatpush.msra.mxu0 0.0
    %167 = vmatpush.msra.mxu0 0.0
    %168 = vmatpush.msra.mxu0 0.0
    %169 = vmatpush.msra.mxu0 0.0
    %170 = vmatpush.msra.mxu0 0.0
    %171 = vmatpush.msra.mxu0 0.0
    %172 = vmatpush.msra.mxu0 0.0
    %173 = vmatpush.msra.mxu0 0.0
    %174 = vmatpush.msra.mxu0 0.0
    %175 = vmatpush.msra.mxu0 %v92
    %176 = vmatpush.msra.mxu0 %v91
    %177 = vmatpush.msra.mxu0 %v90
    %178 = vmatpush.msra.mxu0 %v89
    %179 = vmatmul.f32.gmra.mxu0 %v161
    %v180 = vpop.f32.mrf.mxu0
    %v181 = vadd.f32 0.0, %v180
    %182 = vdwg.mxu0
    %v184 = vrot.slane %v181, 6
    %v186 = vadd.f32 %v84, %v184
    %v187 = vxor.u32 %v186, 2147483648
    %v188 = vmul.f32 %v187, 1.442695
    %v189 = vpow.pop %v188
    %v190 = vadd.f32 %v189, 1.0
    %v191 = vrcp.pop %v190
    %v192 = vmul.f32 %v190, %v191
    %v193 = vsub.f32 1.0, %v192
    %v194 = vmul.f32 %v191, %v193
    %v195 = vadd.f32 %v191, %v194
    %vm196 = vweird.f32 %v190
    %vm197 = vweird.f32 %v191
    %vm198 = vmor %vm196, %vm197
    %v199 = vsel %vm198, %v191, %v195
    %v200 = vand.u32 2147483647, %v190
    %vm201 = vcmp.eq.f32.partialorder %v200, 8.507059e+37
    %v202 = vand.u32 %v190, 2147483648
    %v203 = vor.u32 1.1754944e-38, %v202
    %v204 = vsel %vm201, %v203, %v199
    %v205 = vmul.f32 1.0, %v204
    %v206 = vtanh.pop %v186
    %v208 = vrot.slane %v148, 6
    %v210 = vmul.f32 %v205, %v208
    %212 = vrot.lane.b32.xlu0 %v206, 32
    %v213 = vpop.permute.xlu0 %212
    %v215 = vmul.f32 %v205, %v213
    %217 = vrot.lane.b32.xlu0 %v215, 32
    %v218 = vpop.permute.xlu0 %217
    %v220 = vadd.f32 %v210, %v218
    %v221 = vtanh.pop %v220
    %223 = vrot.lane.b32.xlu0 %v221, 32
    %v224 = vpop.permute.xlu0 %223
    %v226 = vmul.f32 %v205, %v224
    %228 = vrot.lane.b32.xlu0 %v226, 64
    %v229 = vpop.permute.xlu0 %228
    %vm231 = vcmask 257026
    %232 = vst.msk [vmem:[#allocation2] sm:$0xc] %vm231, %v229
    %v233 = vrot.slane %v226, 2
    %234 = vrot.lane.b32.xlu0 %v233, 64
    %v235 = vpop.permute.xlu0 %234
    %v236 = vsel %vm93, %v235, 0
    %238 = vmatpush.msra.mxu0 0.0
    %239 = vmatpush.msra.mxu0 0.0
    %240 = vmatpush.msra.mxu0 0.0
    %241 = vmatpush.msra.mxu0 0.0
    %242 = vmatpush.msra.mxu0 0.0
    %243 = vmatpush.msra.mxu0 0.0
    %244 = vmatpush.msra.mxu0 0.0
    %245 = vmatpush.msra.mxu0 0.0
    %246 = vmatpush.msra.mxu0 0.0
    %247 = vmatpush.msra.mxu0 0.0
    %248 = vmatpush.msra.mxu0 0.0
    %249 = vmatpush.msra.mxu0 0.0
    %250 = vmatpush.msra.mxu0 %v92
    %251 = vmatpush.msra.mxu0 %v91
    %252 = vmatpush.msra.mxu0 %v90
    %253 = vmatpush.msra.mxu0 %v89
    %254 = vmatmul.f32.gmra.mxu0 %v236
    %v255 = vpop.f32.mrf.mxu0
    %v256 = vadd.f32 0.0, %v255
    %257 = vdwg.mxu0
    %v259 = vrot.slane %v256, 4
    %v261 = vadd.f32 %v84, %v259
    %v262 = vxor.u32 %v261, 2147483648
    %v263 = vmul.f32 %v262, 1.442695
    %v264 = vpow.pop %v263
    %v265 = vadd.f32 %v264, 1.0
    %v266 = vrcp.pop %v265
    %v267 = vmul.f32 %v265, %v266
    %v268 = vsub.f32 1.0, %v267
    %v269 = vmul.f32 %v266, %v268
    %v270 = vadd.f32 %v266, %v269
    %vm271 = vweird.f32 %v265
    %vm272 = vweird.f32 %v266
    %vm273 = vmor %vm271, %vm272
    %v274 = vsel %vm273, %v266, %v270
    %v275 = vand.u32 2147483647, %v265
    %vm276 = vcmp.eq.f32.partialorder %v275, 8.507059e+37
    %v277 = vand.u32 %v265, 2147483648
    %v278 = vor.u32 1.1754944e-38, %v277
    %v279 = vsel %vm276, %v278, %v274
    %v280 = vmul.f32 1.0, %v279
    %v281 = vtanh.pop %v261
    %v283 = vrot.slane %v220, 6
    %v285 = vmul.f32 %v280, %v283
    %287 = vrot.lane.b32.xlu0 %v281, 32
    %v288 = vpop.permute.xlu0 %287
    %v290 = vmul.f32 %v280, %v288
    %292 = vrot.lane.b32.xlu0 %v290, 32
    %v293 = vpop.permute.xlu0 %292
    %v295 = vadd.f32 %v285, %v293
    %v296 = vtanh.pop %v295
    %298 = vrot.lane.b32.xlu0 %v296, 32
    %v299 = vpop.permute.xlu0 %298
    %v301 = vmul.f32 %v280, %v299
    %303 = vrot.lane.b32.xlu0 %v301, 64
    %v304 = vpop.permute.xlu0 %303
    %vm306 = vcmask 259076
    %307 = vst.msk [vmem:[#allocation2] sm:$0x30] %vm306, %v304
    %v308 = vrot.slane %v301, 4
    %309 = vrot.lane.b32.xlu0 %v308, 64
    %v310 = vpop.permute.xlu0 %309
    %v311 = vsel %vm93, %v310, 0
    %313 = vmatpush.msra.mxu0 0.0
    %314 = vmatpush.msra.mxu0 0.0
    %315 = vmatpush.msra.mxu0 0.0
    %316 = vmatpush.msra.mxu0 0.0
    %317 = vmatpush.msra.mxu0 0.0
    %318 = vmatpush.msra.mxu0 0.0
    %319 = vmatpush.msra.mxu0 0.0
    %320 = vmatpush.msra.mxu0 0.0
    %321 = vmatpush.msra.mxu0 0.0
    %322 = vmatpush.msra.mxu0 0.0
    %323 = vmatpush.msra.mxu0 0.0
    %324 = vmatpush.msra.mxu0 0.0
    %325 = vmatpush.msra.mxu0 %v92
    %326 = vmatpush.msra.mxu0 %v91
    %327 = vmatpush.msra.mxu0 %v90
    %328 = vmatpush.msra.mxu0 %v89
    %329 = vmatmul.f32.gmra.mxu0 %v311
    %v330 = vpop.f32.mrf.mxu0
    %v331 = vadd.f32 0.0, %v330
    %332 = vdwg.mxu0
    %v334 = vrot.slane %v331, 2
    %v336 = vadd.f32 %v84, %v334
    %v337 = vxor.u32 %v336, 2147483648
    %v338 = vmul.f32 %v337, 1.442695
    %v339 = vpow.pop %v338
    %v340 = vadd.f32 %v339, 1.0
    %v341 = vrcp.pop %v340
    %v342 = vmul.f32 %v340, %v341
    %v343 = vsub.f32 1.0, %v342
    %v344 = vmul.f32 %v341, %v343
    %v345 = vadd.f32 %v341, %v344
    %vm346 = vweird.f32 %v340
    %vm347 = vweird.f32 %v341
    %vm348 = vmor %vm346, %vm347
    %v349 = vsel %vm348, %v341, %v345
    %v350 = vand.u32 2147483647, %v340
    %vm351 = vcmp.eq.f32.partialorder %v350, 8.507059e+37
    %v352 = vand.u32 %v340, 2147483648
    %v353 = vor.u32 1.1754944e-38, %v352
    %v354 = vsel %vm351, %v353, %v349
    %v355 = vmul.f32 1.0, %v354
    %v356 = vtanh.pop %v336
    %v358 = vrot.slane %v295, 6
    %v360 = vmul.f32 %v355, %v358
    %362 = vrot.lane.b32.xlu0 %v356, 32
    %v363 = vpop.permute.xlu0 %362
    %v365 = vmul.f32 %v355, %v363
    %367 = vrot.lane.b32.xlu0 %v365, 32
    %v368 = vpop.permute.xlu0 %367
    %v370 = vadd.f32 %v360, %v368
    %v371 = vtanh.pop %v370
    %373 = vrot.lane.b32.xlu0 %v371, 32
    %v374 = vpop.permute.xlu0 %373
    %v376 = vmul.f32 %v355, %v374
    %378 = vrot.lane.b32.xlu0 %v376, 64
    %v379 = vpop.permute.xlu0 %378
    %vm381 = vcmask 261126
    %382 = vst.msk [vmem:[#allocation2] sm:$0xc0] %vm381, %v379
    %v383 = vrot.slane %v376, 6
    %384 = vrot.lane.b32.xlu0 %v383, 64
    %v385 = vpop.permute.xlu0 %384
    %v386 = vsel %vm93, %v385, 0
    %388 = vmatpush.msra.mxu0 0.0
    %389 = vmatpush.msra.mxu0 0.0
    %390 = vmatpush.msra.mxu0 0.0
    %391 = vmatpush.msra.mxu0 0.0
    %392 = vmatpush.msra.mxu0 0.0
    %393 = vmatpush.msra.mxu0 0.0
    %394 = vmatpush.msra.mxu0 0.0
    %395 = vmatpush.msra.mxu0 0.0
    %396 = vmatpush.msra.mxu0 0.0
    %397 = vmatpush.msra.mxu0 0.0
    %398 = vmatpush.msra.mxu0 0.0
    %399 = vmatpush.msra.mxu0 0.0
    %400 = vmatpush.msra.mxu0 %v92
    %401 = vmatpush.msra.mxu0 %v91
    %402 = vmatpush.msra.mxu0 %v90
    %403 = vmatpush.msra.mxu0 %v89
    %404 = vmatmul.f32.gmra.mxu0 %v386
    %v405 = vpop.f32.mrf.mxu0
    %v406 = vadd.f32 0.0, %v405
    %407 = vdwg.mxu0
    %v408 = vadd.f32 %v87, %v406
    %v409 = vxor.u32 %v408, 2147483648
    %v410 = vmul.f32 %v409, 1.442695
    %v411 = vpow.pop %v410
    %v412 = vadd.f32 %v411, 1.0
    %v413 = vrcp.pop %v412
    %v414 = vmul.f32 %v412, %v413
    %v415 = vsub.f32 1.0, %v414
    %v416 = vmul.f32 %v413, %v415
    %v417 = vadd.f32 %v413, %v416
    %vm418 = vweird.f32 %v412
    %vm419 = vweird.f32 %v413
    %vm420 = vmor %vm418, %vm419
    %v421 = vsel %vm420, %v413, %v417
    %v422 = vand.u32 2147483647, %v412
    %vm423 = vcmp.eq.f32.partialorder %v422, 8.507059e+37
    %v424 = vand.u32 %v412, 2147483648
    %v425 = vor.u32 1.1754944e-38, %v424
    %v426 = vsel %vm423, %v425, %v421
    %v427 = vmul.f32 1.0, %v426
    %v428 = vtanh.pop %v408
    %v430 = vrot.slane %v370, 6
    %v432 = vmul.f32 %v427, %v430
    %434 = vrot.lane.b32.xlu0 %v428, 32
    %v435 = vpop.permute.xlu0 %434
    %v437 = vmul.f32 %v427, %v435
    %439 = vrot.lane.b32.xlu0 %v437, 32
    %v440 = vpop.permute.xlu0 %439
    %v442 = vadd.f32 %v432, %v440
    %v443 = vtanh.pop %v442
    %445 = vrot.lane.b32.xlu0 %v443, 32
    %v446 = vpop.permute.xlu0 %445
    %v448 = vmul.f32 %v427, %v446
    %450 = vrot.lane.b32.xlu0 %v448, 64
    %v451 = vpop.permute.xlu0 %450
    %453 = vst.msk [vmem:[#allocation2 + $0x8] sm:$0x3] %vm159, %v451
    %v454 = vsel %vm93, %v451, 0
    %456 = vmatpush.msra.mxu0 0.0
    %457 = vmatpush.msra.mxu0 0.0
    %458 = vmatpush.msra.mxu0 0.0
    %459 = vmatpush.msra.mxu0 0.0
    %460 = vmatpush.msra.mxu0 0.0
    %461 = vmatpush.msra.mxu0 0.0
    %462 = vmatpush.msra.mxu0 0.0
    %463 = vmatpush.msra.mxu0 0.0
    %464 = vmatpush.msra.mxu0 0.0
    %465 = vmatpush.msra.mxu0 0.0
    %466 = vmatpush.msra.mxu0 0.0
    %467 = vmatpush.msra.mxu0 0.0
    %468 = vmatpush.msra.mxu0 %v92
    %469 = vmatpush.msra.mxu0 %v91
    %470 = vmatpush.msra.mxu0 %v90
    %471 = vmatpush.msra.mxu0 %v89
    %472 = vmatmul.f32.gmra.mxu0 %v454
    %v473 = vpop.f32.mrf.mxu0
    %v474 = vadd.f32 0.0, %v473
    %475 = vdwg.mxu0
    %v477 = vrot.slane %v474, 6
    %v479 = vadd.f32 %v87, %v477
    %v480 = vxor.u32 %v479, 2147483648
    %v481 = vmul.f32 %v480, 1.442695
    %v482 = vpow.pop %v481
    %v483 = vadd.f32 %v482, 1.0
    %v484 = vrcp.pop %v483
    %v485 = vmul.f32 %v483, %v484
    %v486 = vsub.f32 1.0, %v485
    %v487 = vmul.f32 %v484, %v486
    %v488 = vadd.f32 %v484, %v487
    %vm489 = vweird.f32 %v483
    %vm490 = vweird.f32 %v484
    %vm491 = vmor %vm489, %vm490
    %v492 = vsel %vm491, %v484, %v488
    %v493 = vand.u32 2147483647, %v483
    %vm494 = vcmp.eq.f32.partialorder %v493, 8.507059e+37
    %v495 = vand.u32 %v483, 2147483648
    %v496 = vor.u32 1.1754944e-38, %v495
    %v497 = vsel %vm494, %v496, %v492
    %v498 = vmul.f32 1.0, %v497
    %v499 = vtanh.pop %v479
    %v501 = vrot.slane %v442, 6
    %v503 = vmul.f32 %v498, %v501
    %505 = vrot.lane.b32.xlu0 %v499, 32
    %v506 = vpop.permute.xlu0 %505
    %v508 = vmul.f32 %v498, %v506
    %510 = vrot.lane.b32.xlu0 %v508, 32
    %v511 = vpop.permute.xlu0 %510
    %v513 = vadd.f32 %v503, %v511
    %v514 = vtanh.pop %v513
    %516 = vrot.lane.b32.xlu0 %v514, 32
    %v517 = vpop.permute.xlu0 %516
    %v519 = vmul.f32 %v498, %v517
    %521 = vrot.lane.b32.xlu0 %v519, 64
    %v522 = vpop.permute.xlu0 %521
    %524 = vst.msk [vmem:[#allocation2 + $0x8] sm:$0xc] %vm231, %v522
    %v525 = vrot.slane %v519, 2
    %526 = vrot.lane.b32.xlu0 %v525, 64
    %v527 = vpop.permute.xlu0 %526
    %v528 = vsel %vm93, %v527, 0
    %530 = vmatpush.msra.mxu0 0.0
    %531 = vmatpush.msra.mxu0 0.0
    %532 = vmatpush.msra.mxu0 0.0
    %533 = vmatpush.msra.mxu0 0.0
    %534 = vmatpush.msra.mxu0 0.0
    %535 = vmatpush.msra.mxu0 0.0
    %536 = vmatpush.msra.mxu0 0.0
    %537 = vmatpush.msra.mxu0 0.0
    %538 = vmatpush.msra.mxu0 0.0
    %539 = vmatpush.msra.mxu0 0.0
    %540 = vmatpush.msra.mxu0 0.0
    %541 = vmatpush.msra.mxu0 0.0
    %542 = vmatpush.msra.mxu0 %v92
    %543 = vmatpush.msra.mxu0 %v91
    %544 = vmatpush.msra.mxu0 %v90
    %545 = vmatpush.msra.mxu0 %v89
    %546 = vmatmul.f32.gmra.mxu0 %v528
    %v547 = vpop.f32.mrf.mxu0
    %v548 = vadd.f32 0.0, %v547
    %549 = vdwg.mxu0
    %v551 = vrot.slane %v548, 4
    %v553 = vadd.f32 %v87, %v551
    %v554 = vxor.u32 %v553, 2147483648
    %v555 = vmul.f32 %v554, 1.442695
    %v556 = vpow.pop %v555
    %v557 = vadd.f32 %v556, 1.0
    %v558 = vrcp.pop %v557
    %v559 = vmul.f32 %v557, %v558
    %v560 = vsub.f32 1.0, %v559
    %v561 = vmul.f32 %v558, %v560
    %v562 = vadd.f32 %v558, %v561
    %vm563 = vweird.f32 %v557
    %vm564 = vweird.f32 %v558
    %vm565 = vmor %vm563, %vm564
    %v566 = vsel %vm565, %v558, %v562
    %v567 = vand.u32 2147483647, %v557
    %vm568 = vcmp.eq.f32.partialorder %v567, 8.507059e+37
    %v569 = vand.u32 %v557, 2147483648
    %v570 = vor.u32 1.1754944e-38, %v569
    %v571 = vsel %vm568, %v570, %v566
    %v572 = vmul.f32 1.0, %v571
    %v573 = vtanh.pop %v553
    %v575 = vrot.slane %v513, 6
    %v577 = vmul.f32 %v572, %v575
    %579 = vrot.lane.b32.xlu0 %v573, 32
    %v580 = vpop.permute.xlu0 %579
    %v582 = vmul.f32 %v572, %v580
    %584 = vrot.lane.b32.xlu0 %v582, 32
    %v585 = vpop.permute.xlu0 %584
    %v587 = vadd.f32 %v577, %v585
    %v588 = vtanh.pop %v587
    %590 = vrot.lane.b32.xlu0 %v588, 32
    %v591 = vpop.permute.xlu0 %590
    %v593 = vmul.f32 %v572, %v591
    %595 = vrot.lane.b32.xlu0 %v593, 64
    %v596 = vpop.permute.xlu0 %595
    %598 = vst.msk [vmem:[#allocation2 + $0x8] sm:$0x30] %vm306, %v596
    %v599 = vrot.slane %v593, 4
    %600 = vrot.lane.b32.xlu0 %v599, 64
    %v601 = vpop.permute.xlu0 %600
    %v602 = vsel %vm93, %v601, 0
    %604 = vmatpush.msra.mxu0 0.0
    %605 = vmatpush.msra.mxu0 0.0
    %606 = vmatpush.msra.mxu0 0.0
    %607 = vmatpush.msra.mxu0 0.0
    %608 = vmatpush.msra.mxu0 0.0
    %609 = vmatpush.msra.mxu0 0.0
    %610 = vmatpush.msra.mxu0 0.0
    %611 = vmatpush.msra.mxu0 0.0
    %612 = vmatpush.msra.mxu0 0.0
    %613 = vmatpush.msra.mxu0 0.0
    %614 = vmatpush.msra.mxu0 0.0
    %615 = vmatpush.msra.mxu0 0.0
    %616 = vmatpush.msra.mxu0 %v92
    %617 = vmatpush.msra.mxu0 %v91
    %618 = vmatpush.msra.mxu0 %v90
    %619 = vmatpush.msra.mxu0 %v89
    %620 = vmatmul.f32.gmra.mxu0 %v602
    %v621 = vpop.f32.mrf.mxu0
    %v622 = vadd.f32 0.0, %v621
    %623 = vdwg.mxu0
    %v625 = vrot.slane %v622, 2
    %v627 = vadd.f32 %v87, %v625
    %v628 = vxor.u32 %v627, 2147483648
    %v629 = vmul.f32 %v628, 1.442695
    %v630 = vpow.pop %v629
    %v631 = vadd.f32 %v630, 1.0
    %v632 = vrcp.pop %v631
    %v633 = vmul.f32 %v631, %v632
    %v634 = vsub.f32 1.0, %v633
    %v635 = vmul.f32 %v632, %v634
    %v636 = vadd.f32 %v632, %v635
    %vm637 = vweird.f32 %v631
    %vm638 = vweird.f32 %v632
    %vm639 = vmor %vm637, %vm638
    %v640 = vsel %vm639, %v632, %v636
    %v641 = vand.u32 2147483647, %v631
    %vm642 = vcmp.eq.f32.partialorder %v641, 8.507059e+37
    %v643 = vand.u32 %v631, 2147483648
    %v644 = vor.u32 1.1754944e-38, %v643
    %v645 = vsel %vm642, %v644, %v640
    %v646 = vmul.f32 1.0, %v645
    %v647 = vtanh.pop %v627
    %v649 = vrot.slane %v587, 6
    %v651 = vmul.f32 %v646, %v649
    %653 = vrot.lane.b32.xlu0 %v647, 32
    %v654 = vpop.permute.xlu0 %653
    %v656 = vmul.f32 %v646, %v654
    %658 = vrot.lane.b32.xlu0 %v656, 32
    %v659 = vpop.permute.xlu0 %658
    %v661 = vadd.f32 %v651, %v659
    %v662 = vtanh.pop %v661
    %664 = vrot.lane.b32.xlu0 %v662, 32
    %v665 = vpop.permute.xlu0 %664
    %v667 = vmul.f32 %v646, %v665
    %669 = vrot.lane.b32.xlu0 %v667, 64
    %v670 = vpop.permute.xlu0 %669
    %672 = vst.msk [vmem:[#allocation2 + $0x8] sm:$0xc0] %vm381, %v670
    %674 = vrot.lane.b32.xlu0 %v661, 96
    %v675 = vpop.permute.xlu0 %674
    %677 = vst.msk [vmem:[#allocation4 - $0x6] sm:$0xc0] %vm381, %v675
    %v678 = vld [vmem:[#allocation2] sm:$0xff]
    %v679 = vld [vmem:[#allocation2 + $0x8] sm:$0xff]
    %v680 = vld [vmem:[%s4] sm:$0xff]
    %v681 = vld [vmem:[%s4 + $0x8] sm:$0xff]
    %v682 = vld [vmem:[%s4 + $0x10] sm:$0xff]
    %v683 = vld [vmem:[%s4 + $0x18] sm:$0xff]
    %v684 = vld [vmem:[%s6] sm:$0x1]
    %v686 = vperm.slane %v684, 0
    %v689 = vsel %vm93, %v678, 0
    %v692 = vsel %vm93, %v679, 0
    %694 = vmatpush.msra.mxu0 0.0
    %695 = vmatpush.msra.mxu0 0.0
    %696 = vmatpush.msra.mxu0 0.0
    %697 = vmatpush.msra.mxu0 0.0
    %698 = vmatpush.msra.mxu0 0.0
    %699 = vmatpush.msra.mxu0 0.0
    %700 = vmatpush.msra.mxu0 0.0
    %701 = vmatpush.msra.mxu0 0.0
    %702 = vmatpush.msra.mxu0 0.0
    %703 = vmatpush.msra.mxu0 0.0
    %704 = vmatpush.msra.mxu0 0.0
    %705 = vmatpush.msra.mxu0 0.0
    %706 = vmatpush.msra.mxu0 %v683
    %707 = vmatpush.msra.mxu0 %v682
    %708 = vmatpush.msra.mxu0 %v681
    %709 = vmatpush.msra.mxu0 %v680
    %710 = vmatmul.f32.gmra.mxu0 %v689
    %v711 = vpop.f32.mrf.mxu0
    %v712 = vadd.f32 %v686, %v711
    %713 = vmatmul.f32.gmra.mxu0 %v692
    %v714 = vpop.f32.mrf.mxu0
    %v715 = vadd.f32 %v686, %v714
    %716 = vdwg.mxu0
    %v717 = vld [vmem:[#allocation5] sm:$0xff]
    %v718 = vld [vmem:[#allocation5 + $0x8] sm:$0xff]
    %v719 = vld [vmem:[#allocation5 + $0x10] sm:$0xff]
    %v720 = vld [vmem:[#allocation5 + $0x18] sm:$0xff]
    %721 = vmatpush.msra.mxu0 0.0
    %722 = vmatpush.msra.mxu0 0.0
    %723 = vmatpush.msra.mxu0 0.0
    %724 = vmatpush.msra.mxu0 0.0
    %725 = vmatpush.msra.mxu0 0.0
    %726 = vmatpush.msra.mxu0 0.0
    %727 = vmatpush.msra.mxu0 0.0
    %728 = vmatpush.msra.mxu0 0.0
    %729 = vmatpush.msra.mxu0 0.0
    %730 = vmatpush.msra.mxu0 0.0
    %731 = vmatpush.msra.mxu0 0.0
    %732 = vmatpush.msra.mxu0 0.0
    %733 = vmatpush.msra.mxu0 %v720
    %734 = vmatpush.msra.mxu0 %v719
    %735 = vmatpush.msra.mxu0 %v718
    %736 = vmatpush.msra.mxu0 %v717
    %737 = vmatmul.f32.gmra.mxu0 %v95
    %v738 = vpop.f32.mrf.mxu0
    %v739 = vadd.f32 0.0, %v738
    %740 = vdwg.mxu0
    %v741 = vadd.f32 %v712, %v739
    %v742 = vxor.u32 %v741, 2147483648
    %v743 = vmul.f32 %v742, 1.442695
    %v744 = vpow.pop %v743
    %v745 = vadd.f32 %v744, 1.0
    %v746 = vrcp.pop %v745
    %v747 = vmul.f32 %v745, %v746
    %v748 = vsub.f32 1.0, %v747
    %v749 = vmul.f32 %v746, %v748
    %v750 = vadd.f32 %v746, %v749
    %vm751 = vweird.f32 %v745
    %vm752 = vweird.f32 %v746
    %vm753 = vmor %vm751, %vm752
    %v754 = vsel %vm753, %v746, %v750
    %v755 = vand.u32 2147483647, %v745
    %vm756 = vcmp.eq.f32.partialorder %v755, 8.507059e+37
    %v757 = vand.u32 %v745, 2147483648
    %v758 = vor.u32 1.1754944e-38, %v757
    %v759 = vsel %vm756, %v758, %v754
    %v760 = vmul.f32 1.0, %v759
    %v761 = vtanh.pop %v741
    %v762 = vmul.f32 %v760, 0.0
    %764 = vrot.lane.b32.xlu0 %v761, 32
    %v765 = vpop.permute.xlu0 %764
    %v767 = vmul.f32 %v760, %v765
    %769 = vrot.lane.b32.xlu0 %v767, 32
    %v770 = vpop.permute.xlu0 %769
    %v772 = vadd.f32 %v762, %v770
    %v773 = vtanh.pop %v772
    %775 = vrot.lane.b32.xlu0 %v773, 32
    %v776 = vpop.permute.xlu0 %775
    %v778 = vmul.f32 %v760, %v776
    %780 = vrot.lane.b32.xlu0 %v778, 64
    %v781 = vpop.permute.xlu0 %780
    %v782 = vsel %vm93, %v781, 0
    %784 = vmatpush.msra.mxu0 0.0
    %785 = vmatpush.msra.mxu0 0.0
    %786 = vmatpush.msra.mxu0 0.0
    %787 = vmatpush.msra.mxu0 0.0
    %788 = vmatpush.msra.mxu0 0.0
    %789 = vmatpush.msra.mxu0 0.0
    %790 = vmatpush.msra.mxu0 0.0
    %791 = vmatpush.msra.mxu0 0.0
    %792 = vmatpush.msra.mxu0 0.0
    %793 = vmatpush.msra.mxu0 0.0
    %794 = vmatpush.msra.mxu0 0.0
    %795 = vmatpush.msra.mxu0 0.0
    %796 = vmatpush.msra.mxu0 %v720
    %797 = vmatpush.msra.mxu0 %v719
    %798 = vmatpush.msra.mxu0 %v718
    %799 = vmatpush.msra.mxu0 %v717
    %800 = vmatmul.f32.gmra.mxu0 %v782
    %v801 = vpop.f32.mrf.mxu0
    %v802 = vadd.f32 0.0, %v801
    %803 = vdwg.mxu0
    %v805 = vrot.slane %v802, 6
    %v807 = vadd.f32 %v712, %v805
    %v808 = vxor.u32 %v807, 2147483648
    %v809 = vmul.f32 %v808, 1.442695
    %v810 = vpow.pop %v809
    %v811 = vadd.f32 %v810, 1.0
    %v812 = vrcp.pop %v811
    %v813 = vmul.f32 %v811, %v812
    %v814 = vsub.f32 1.0, %v813
    %v815 = vmul.f32 %v812, %v814
    %v816 = vadd.f32 %v812, %v815
    %vm817 = vweird.f32 %v811
    %vm818 = vweird.f32 %v812
    %vm819 = vmor %vm817, %vm818
    %v820 = vsel %vm819, %v812, %v816
    %v821 = vand.u32 2147483647, %v811
    %vm822 = vcmp.eq.f32.partialorder %v821, 8.507059e+37
    %v823 = vand.u32 %v811, 2147483648
    %v824 = vor.u32 1.1754944e-38, %v823
    %v825 = vsel %vm822, %v824, %v820
    %v826 = vmul.f32 1.0, %v825
    %v827 = vtanh.pop %v807
    %v829 = vrot.slane %v772, 6
    %v831 = vmul.f32 %v826, %v829
    %833 = vrot.lane.b32.xlu0 %v827, 32
    %v834 = vpop.permute.xlu0 %833
    %v836 = vmul.f32 %v826, %v834
    %838 = vrot.lane.b32.xlu0 %v836, 32
    %v839 = vpop.permute.xlu0 %838
    %v841 = vadd.f32 %v831, %v839
    %v842 = vtanh.pop %v841
    %844 = vrot.lane.b32.xlu0 %v842, 32
    %v845 = vpop.permute.xlu0 %844
    %v847 = vmul.f32 %v826, %v845
    %v849 = vrot.slane %v847, 2
    %850 = vrot.lane.b32.xlu0 %v849, 64
    %v851 = vpop.permute.xlu0 %850
    %v852 = vsel %vm93, %v851, 0
    %854 = vmatpush.msra.mxu0 0.0
    %855 = vmatpush.msra.mxu0 0.0
    %856 = vmatpush.msra.mxu0 0.0
    %857 = vmatpush.msra.mxu0 0.0
    %858 = vmatpush.msra.mxu0 0.0
    %859 = vmatpush.msra.mxu0 0.0
    %860 = vmatpush.msra.mxu0 0.0
    %861 = vmatpush.msra.mxu0 0.0
    %862 = vmatpush.msra.mxu0 0.0
    %863 = vmatpush.msra.mxu0 0.0
    %864 = vmatpush.msra.mxu0 0.0
    %865 = vmatpush.msra.mxu0 0.0
    %866 = vmatpush.msra.mxu0 %v720
    %867 = vmatpush.msra.mxu0 %v719
    %868 = vmatpush.msra.mxu0 %v718
    %869 = vmatpush.msra.mxu0 %v717
    %870 = vmatmul.f32.gmra.mxu0 %v852
    %v871 = vpop.f32.mrf.mxu0
    %v872 = vadd.f32 0.0, %v871
    %873 = vdwg.mxu0
    %v875 = vrot.slane %v872, 4
    %v877 = vadd.f32 %v712, %v875
    %v878 = vxor.u32 %v877, 2147483648
    %v879 = vmul.f32 %v878, 1.442695
    %v880 = vpow.pop %v879
    %v881 = vadd.f32 %v880, 1.0
    %v882 = vrcp.pop %v881
    %v883 = vmul.f32 %v881, %v882
    %v884 = vsub.f32 1.0, %v883
    %v885 = vmul.f32 %v882, %v884
    %v886 = vadd.f32 %v882, %v885
    %vm887 = vweird.f32 %v881
    %vm888 = vweird.f32 %v882
    %vm889 = vmor %vm887, %vm888
    %v890 = vsel %vm889, %v882, %v886
    %v891 = vand.u32 2147483647, %v881
    %vm892 = vcmp.eq.f32.partialorder %v891, 8.507059e+37
    %v893 = vand.u32 %v881, 2147483648
    %v894 = vor.u32 1.1754944e-38, %v893
    %v895 = vsel %vm892, %v894, %v890
    %v896 = vmul.f32 1.0, %v895
    %v897 = vtanh.pop %v877
    %v899 = vrot.slane %v841, 6
    %v901 = vmul.f32 %v896, %v899
    %903 = vrot.lane.b32.xlu0 %v897, 32
    %v904 = vpop.permute.xlu0 %903
    %v906 = vmul.f32 %v896, %v904
    %908 = vrot.lane.b32.xlu0 %v906, 32
    %v909 = vpop.permute.xlu0 %908
    %v911 = vadd.f32 %v901, %v909
    %v912 = vtanh.pop %v911
    %914 = vrot.lane.b32.xlu0 %v912, 32
    %v915 = vpop.permute.xlu0 %914
    %v917 = vmul.f32 %v896, %v915
    %v919 = vrot.slane %v917, 4
    %920 = vrot.lane.b32.xlu0 %v919, 64
    %v921 = vpop.permute.xlu0 %920
    %v922 = vsel %vm93, %v921, 0
    %924 = vmatpush.msra.mxu0 0.0
    %925 = vmatpush.msra.mxu0 0.0
    %926 = vmatpush.msra.mxu0 0.0
    %927 = vmatpush.msra.mxu0 0.0
    %928 = vmatpush.msra.mxu0 0.0
    %929 = vmatpush.msra.mxu0 0.0
    %930 = vmatpush.msra.mxu0 0.0
    %931 = vmatpush.msra.mxu0 0.0
    %932 = vmatpush.msra.mxu0 0.0
    %933 = vmatpush.msra.mxu0 0.0
    %934 = vmatpush.msra.mxu0 0.0
    %935 = vmatpush.msra.mxu0 0.0
    %936 = vmatpush.msra.mxu0 %v720
    %937 = vmatpush.msra.mxu0 %v719
    %938 = vmatpush.msra.mxu0 %v718
    %939 = vmatpush.msra.mxu0 %v717
    %940 = vmatmul.f32.gmra.mxu0 %v922
    %v941 = vpop.f32.mrf.mxu0
    %v942 = vadd.f32 0.0, %v941
    %943 = vdwg.mxu0
    %v945 = vrot.slane %v942, 2
    %v947 = vadd.f32 %v712, %v945
    %v948 = vxor.u32 %v947, 2147483648
    %v949 = vmul.f32 %v948, 1.442695
    %v950 = vpow.pop %v949
    %v951 = vadd.f32 %v950, 1.0
    %v952 = vrcp.pop %v951
    %v953 = vmul.f32 %v951, %v952
    %v954 = vsub.f32 1.0, %v953
    %v955 = vmul.f32 %v952, %v954
    %v956 = vadd.f32 %v952, %v955
    %vm957 = vweird.f32 %v951
    %vm958 = vweird.f32 %v952
    %vm959 = vmor %vm957, %vm958
    %v960 = vsel %vm959, %v952, %v956
    %v961 = vand.u32 2147483647, %v951
    %vm962 = vcmp.eq.f32.partialorder %v961, 8.507059e+37
    %v963 = vand.u32 %v951, 2147483648
    %v964 = vor.u32 1.1754944e-38, %v963
    %v965 = vsel %vm962, %v964, %v960
    %v966 = vmul.f32 1.0, %v965
    %v967 = vtanh.pop %v947
    %v969 = vrot.slane %v911, 6
    %v971 = vmul.f32 %v966, %v969
    %973 = vrot.lane.b32.xlu0 %v967, 32
    %v974 = vpop.permute.xlu0 %973
    %v976 = vmul.f32 %v966, %v974
    %978 = vrot.lane.b32.xlu0 %v976, 32
    %v979 = vpop.permute.xlu0 %978
    %v981 = vadd.f32 %v971, %v979
    %v982 = vtanh.pop %v981
    %984 = vrot.lane.b32.xlu0 %v982, 32
    %v985 = vpop.permute.xlu0 %984
    %v987 = vmul.f32 %v966, %v985
    %v989 = vrot.slane %v987, 6
    %990 = vrot.lane.b32.xlu0 %v989, 64
    %v991 = vpop.permute.xlu0 %990
    %v992 = vsel %vm93, %v991, 0
    %994 = vmatpush.msra.mxu0 0.0
    %995 = vmatpush.msra.mxu0 0.0
    %996 = vmatpush.msra.mxu0 0.0
    %997 = vmatpush.msra.mxu0 0.0
    %998 = vmatpush.msra.mxu0 0.0
    %999 = vmatpush.msra.mxu0 0.0
    %1000 = vmatpush.msra.mxu0 0.0
    %1001 = vmatpush.msra.mxu0 0.0
    %1002 = vmatpush.msra.mxu0 0.0
    %1003 = vmatpush.msra.mxu0 0.0
    %1004 = vmatpush.msra.mxu0 0.0
    %1005 = vmatpush.msra.mxu0 0.0
    %1006 = vmatpush.msra.mxu0 %v720
    %1007 = vmatpush.msra.mxu0 %v719
    %1008 = vmatpush.msra.mxu0 %v718
    %1009 = vmatpush.msra.mxu0 %v717
    %1010 = vmatmul.f32.gmra.mxu0 %v992
    %v1011 = vpop.f32.mrf.mxu0
    %v1012 = vadd.f32 0.0, %v1011
    %1013 = vdwg.mxu0
    %v1014 = vadd.f32 %v715, %v1012
    %v1015 = vxor.u32 %v1014, 2147483648
    %v1016 = vmul.f32 %v1015, 1.442695
    %v1017 = vpow.pop %v1016
    %v1018 = vadd.f32 %v1017, 1.0
    %v1019 = vrcp.pop %v1018
    %v1020 = vmul.f32 %v1018, %v1019
    %v1021 = vsub.f32 1.0, %v1020
    %v1022 = vmul.f32 %v1019, %v1021
    %v1023 = vadd.f32 %v1019, %v1022
    %vm1024 = vweird.f32 %v1018
    %vm1025 = vweird.f32 %v1019
    %vm1026 = vmor %vm1024, %vm1025
    %v1027 = vsel %vm1026, %v1019, %v1023
    %v1028 = vand.u32 2147483647, %v1018
    %vm1029 = vcmp.eq.f32.partialorder %v1028, 8.507059e+37
    %v1030 = vand.u32 %v1018, 2147483648
    %v1031 = vor.u32 1.1754944e-38, %v1030
    %v1032 = vsel %vm1029, %v1031, %v1027
    %v1033 = vmul.f32 1.0, %v1032
    %v1034 = vtanh.pop %v1014
    %v1036 = vrot.slane %v981, 6
    %v1038 = vmul.f32 %v1033, %v1036
    %1040 = vrot.lane.b32.xlu0 %v1034, 32
    %v1041 = vpop.permute.xlu0 %1040
    %v1043 = vmul.f32 %v1033, %v1041
    %1045 = vrot.lane.b32.xlu0 %v1043, 32
    %v1046 = vpop.permute.xlu0 %1045
    %v1048 = vadd.f32 %v1038, %v1046
    %v1049 = vtanh.pop %v1048
    %1051 = vrot.lane.b32.xlu0 %v1049, 32
    %v1052 = vpop.permute.xlu0 %1051
    %v1054 = vmul.f32 %v1033, %v1052
    %1056 = vrot.lane.b32.xlu0 %v1054, 64
    %v1057 = vpop.permute.xlu0 %1056
    %v1058 = vsel %vm93, %v1057, 0
    %1060 = vmatpush.msra.mxu0 0.0
    %1061 = vmatpush.msra.mxu0 0.0
    %1062 = vmatpush.msra.mxu0 0.0
    %1063 = vmatpush.msra.mxu0 0.0
    %1064 = vmatpush.msra.mxu0 0.0
    %1065 = vmatpush.msra.mxu0 0.0
    %1066 = vmatpush.msra.mxu0 0.0
    %1067 = vmatpush.msra.mxu0 0.0
    %1068 = vmatpush.msra.mxu0 0.0
    %1069 = vmatpush.msra.mxu0 0.0
    %1070 = vmatpush.msra.mxu0 0.0
    %1071 = vmatpush.msra.mxu0 0.0
    %1072 = vmatpush.msra.mxu0 %v720
    %1073 = vmatpush.msra.mxu0 %v719
    %1074 = vmatpush.msra.mxu0 %v718
    %1075 = vmatpush.msra.mxu0 %v717
    %1076 = vmatmul.f32.gmra.mxu0 %v1058
    %v1077 = vpop.f32.mrf.mxu0
    %v1078 = vadd.f32 0.0, %v1077
    %1079 = vdwg.mxu0
    %v1081 = vrot.slane %v1078, 6
    %v1083 = vadd.f32 %v715, %v1081
    %v1084 = vxor.u32 %v1083, 2147483648
    %v1085 = vmul.f32 %v1084, 1.442695
    %v1086 = vpow.pop %v1085
    %v1087 = vadd.f32 %v1086, 1.0
    %v1088 = vrcp.pop %v1087
    %v1089 = vmul.f32 %v1087, %v1088
    %v1090 = vsub.f32 1.0, %v1089
    %v1091 = vmul.f32 %v1088, %v1090
    %v1092 = vadd.f32 %v1088, %v1091
    %vm1093 = vweird.f32 %v1087
    %vm1094 = vweird.f32 %v1088
    %vm1095 = vmor %vm1093, %vm1094
    %v1096 = vsel %vm1095, %v1088, %v1092
    %v1097 = vand.u32 2147483647, %v1087
    %vm1098 = vcmp.eq.f32.partialorder %v1097, 8.507059e+37
    %v1099 = vand.u32 %v1087, 2147483648
    %v1100 = vor.u32 1.1754944e-38, %v1099
    %v1101 = vsel %vm1098, %v1100, %v1096
    %v1102 = vmul.f32 1.0, %v1101
    %v1103 = vtanh.pop %v1083
    %v1105 = vrot.slane %v1048, 6
    %v1107 = vmul.f32 %v1102, %v1105
    %1109 = vrot.lane.b32.xlu0 %v1103, 32
    %v1110 = vpop.permute.xlu0 %1109
    %v1112 = vmul.f32 %v1102, %v1110
    %1114 = vrot.lane.b32.xlu0 %v1112, 32
    %v1115 = vpop.permute.xlu0 %1114
    %v1117 = vadd.f32 %v1107, %v1115
    %v1118 = vtanh.pop %v1117
    %1120 = vrot.lane.b32.xlu0 %v1118, 32
    %v1121 = vpop.permute.xlu0 %1120
    %v1123 = vmul.f32 %v1102, %v1121
    %v1125 = vrot.slane %v1123, 2
    %1126 = vrot.lane.b32.xlu0 %v1125, 64
    %v1127 = vpop.permute.xlu0 %1126
    %v1128 = vsel %vm93, %v1127, 0
    %1130 = vmatpush.msra.mxu0 0.0
    %1131 = vmatpush.msra.mxu0 0.0
    %1132 = vmatpush.msra.mxu0 0.0
    %1133 = vmatpush.msra.mxu0 0.0
    %1134 = vmatpush.msra.mxu0 0.0
    %1135 = vmatpush.msra.mxu0 0.0
    %1136 = vmatpush.msra.mxu0 0.0
    %1137 = vmatpush.msra.mxu0 0.0
    %1138 = vmatpush.msra.mxu0 0.0
    %1139 = vmatpush.msra.mxu0 0.0
    %1140 = vmatpush.msra.mxu0 0.0
    %1141 = vmatpush.msra.mxu0 0.0
    %1142 = vmatpush.msra.mxu0 %v720
    %1143 = vmatpush.msra.mxu0 %v719
    %1144 = vmatpush.msra.mxu0 %v718
    %1145 = vmatpush.msra.mxu0 %v717
    %1146 = vmatmul.f32.gmra.mxu0 %v1128
    %v1147 = vpop.f32.mrf.mxu0
    %v1148 = vadd.f32 0.0, %v1147
    %1149 = vdwg.mxu0
    %v1151 = vrot.slane %v1148, 4
    %v1153 = vadd.f32 %v715, %v1151
    %v1154 = vxor.u32 %v1153, 2147483648
    %v1155 = vmul.f32 %v1154, 1.442695
    %v1156 = vpow.pop %v1155
    %v1157 = vadd.f32 %v1156, 1.0
    %v1158 = vrcp.pop %v1157
    %v1159 = vmul.f32 %v1157, %v1158
    %v1160 = vsub.f32 1.0, %v1159
    %v1161 = vmul.f32 %v1158, %v1160
    %v1162 = vadd.f32 %v1158, %v1161
    %vm1163 = vweird.f32 %v1157
    %vm1164 = vweird.f32 %v1158
    %vm1165 = vmor %vm1163, %vm1164
    %v1166 = vsel %vm1165, %v1158, %v1162
    %v1167 = vand.u32 2147483647, %v1157
    %vm1168 = vcmp.eq.f32.partialorder %v1167, 8.507059e+37
    %v1169 = vand.u32 %v1157, 2147483648
    %v1170 = vor.u32 1.1754944e-38, %v1169
    %v1171 = vsel %vm1168, %v1170, %v1166
    %v1172 = vmul.f32 1.0, %v1171
    %v1173 = vtanh.pop %v1153
    %v1175 = vrot.slane %v1117, 6
    %v1177 = vmul.f32 %v1172, %v1175
    %1179 = vrot.lane.b32.xlu0 %v1173, 32
    %v1180 = vpop.permute.xlu0 %1179
    %v1182 = vmul.f32 %v1172, %v1180
    %1184 = vrot.lane.b32.xlu0 %v1182, 32
    %v1185 = vpop.permute.xlu0 %1184
    %v1187 = vadd.f32 %v1177, %v1185
    %v1188 = vtanh.pop %v1187
    %1190 = vrot.lane.b32.xlu0 %v1188, 32
    %v1191 = vpop.permute.xlu0 %1190
    %v1193 = vmul.f32 %v1172, %v1191
    %v1195 = vrot.slane %v1193, 4
    %1196 = vrot.lane.b32.xlu0 %v1195, 64
    %v1197 = vpop.permute.xlu0 %1196
    %v1198 = vsel %vm93, %v1197, 0
    %1200 = vmatpush.msra.mxu0 0.0
    %1201 = vmatpush.msra.mxu0 0.0
    %1202 = vmatpush.msra.mxu0 0.0
    %1203 = vmatpush.msra.mxu0 0.0
    %1204 = vmatpush.msra.mxu0 0.0
    %1205 = vmatpush.msra.mxu0 0.0
    %1206 = vmatpush.msra.mxu0 0.0
    %1207 = vmatpush.msra.mxu0 0.0
    %1208 = vmatpush.msra.mxu0 0.0
    %1209 = vmatpush.msra.mxu0 0.0
    %1210 = vmatpush.msra.mxu0 0.0
    %1211 = vmatpush.msra.mxu0 0.0
    %1212 = vmatpush.msra.mxu0 %v720
    %1213 = vmatpush.msra.mxu0 %v719
    %1214 = vmatpush.msra.mxu0 %v718
    %1215 = vmatpush.msra.mxu0 %v717
    %1216 = vmatmul.f32.gmra.mxu0 %v1198
    %v1217 = vpop.f32.mrf.mxu0
    %v1218 = vadd.f32 0.0, %v1217
    %1219 = vdwg.mxu0
    %v1221 = vrot.slane %v1218, 2
    %v1223 = vadd.f32 %v715, %v1221
    %v1224 = vxor.u32 %v1223, 2147483648
    %v1225 = vmul.f32 %v1224, 1.442695
    %v1226 = vpow.pop %v1225
    %v1227 = vadd.f32 %v1226, 1.0
    %v1228 = vrcp.pop %v1227
    %v1229 = vmul.f32 %v1227, %v1228
    %v1230 = vsub.f32 1.0, %v1229
    %v1231 = vmul.f32 %v1228, %v1230
    %v1232 = vadd.f32 %v1228, %v1231
    %vm1233 = vweird.f32 %v1227
    %vm1234 = vweird.f32 %v1228
    %vm1235 = vmor %vm1233, %vm1234
    %v1236 = vsel %vm1235, %v1228, %v1232
    %v1237 = vand.u32 2147483647, %v1227
    %vm1238 = vcmp.eq.f32.partialorder %v1237, 8.507059e+37
    %v1239 = vand.u32 %v1227, 2147483648
    %v1240 = vor.u32 1.1754944e-38, %v1239
    %v1241 = vsel %vm1238, %v1240, %v1236
    %v1242 = vmul.f32 1.0, %v1241
    %v1243 = vtanh.pop %v1223
    %v1245 = vrot.slane %v1187, 6
    %v1247 = vmul.f32 %v1242, %v1245
    %1249 = vrot.lane.b32.xlu0 %v1243, 32
    %v1250 = vpop.permute.xlu0 %1249
    %v1252 = vmul.f32 %v1242, %v1250
    %1254 = vrot.lane.b32.xlu0 %v1252, 32
    %v1255 = vpop.permute.xlu0 %1254
    %v1257 = vadd.f32 %v1247, %v1255
    %vm1258 = vcmask 523526
    %1259 = vst.msk [vmem:[#allocation4 - $0x6] sm:$0xc0] %vm1258, %v1257
    %v1260 = vld [vmem:[#allocation4] sm:$0x3]
    %v1261 = vld [vmem:[%s7] sm:$0xff]
    %v1262 = vld [vmem:[%s7 + $0x8] sm:$0xff]
    %v1263 = vld [vmem:[%s7 + $0x10] sm:$0xff]
    %v1264 = vld [vmem:[%s7 + $0x18] sm:$0xff]
    %v1265 = vld [vmem:[%s7 + $0x20] sm:$0xff]
    %v1266 = vld [vmem:[%s7 + $0x28] sm:$0xff]
    %v1267 = vld [vmem:[%s7 + $0x30] sm:$0xff]
    %v1268 = vld [vmem:[%s7 + $0x38] sm:$0xff]
    %vm1269 = vcmask 523264
    %v1271 = vsel %vm1269, %v1260, 0
    %1273 = vmatpush.msra.mxu0 0.0
    %1274 = vmatpush.msra.mxu0 0.0
    %1275 = vmatpush.msra.mxu0 0.0
    %1276 = vmatpush.msra.mxu0 0.0
    %1277 = vmatpush.msra.mxu0 0.0
    %1278 = vmatpush.msra.mxu0 0.0
    %1279 = vmatpush.msra.mxu0 0.0
    %1280 = vmatpush.msra.mxu0 0.0
    %1281 = vmatpush.msra.mxu0 %v1268
    %1282 = vmatpush.msra.mxu0 %v1267
    %1283 = vmatpush.msra.mxu0 %v1266
    %1284 = vmatpush.msra.mxu0 %v1265
    %1285 = vmatpush.msra.mxu0 %v1264
    %1286 = vmatpush.msra.mxu0 %v1263
    %1287 = vmatpush.msra.mxu0 %v1262
    %1288 = vmatpush.msra.mxu0 %v1261
    %1289 = vmatmul.f32.gmra.mxu0 %v1271
    %v1290 = vpop.f32.mrf.mxu0
    %v1291 = vadd.f32 0.0, %v1290
    %1292 = vdwg.mxu0
    %v1293 = vmax.f32 %v1291, 0.0
    %v1294 = vld [vmem:[%s8] sm:$0xf]
    %vm1295 = vcmask 31744
    %v1297 = vsel %vm1295, %v1293, 0
    %vm1299 = vcmask 1043456
    %v1301 = vsel %vm1299, %v1294, 0
    %1303 = vmatpush.msra.mxu0 0.0
    %1304 = vmatpush.msra.mxu0 0.0
    %1305 = vmatpush.msra.mxu0 0.0
    %1306 = vmatpush.msra.mxu0 0.0
    %1307 = vmatpush.msra.mxu0 0.0
    %1308 = vmatpush.msra.mxu0 0.0
    %1309 = vmatpush.msra.mxu0 0.0
    %1310 = vmatpush.msra.mxu0 0.0
    %1311 = vmatpush.msra.mxu0 0.0
    %1312 = vmatpush.msra.mxu0 0.0
    %1313 = vmatpush.msra.mxu0 0.0
    %1314 = vmatpush.msra.mxu0 0.0
    %1315 = vmatpush.msra.mxu0 0.0
    %1316 = vmatpush.msra.mxu0 0.0
    %1317 = vmatpush.msra.mxu0 0.0
    %1318 = vmatpush.msra.mxu0 %v1301
    %1319 = vmatmul.f32.gmra.mxu0 %v1297
    %v1320 = vpop.f32.mrf.mxu0
    %v1321 = vadd.f32 0.0, %v1320
    %1322 = vdwg.mxu0
    %v1323 = vmax.f32 %v1321, 0.0
    %v1324 = vld [vmem:[%s9] sm:$0xf]
    %v1326 = vsel %vm1295, %v1323, 0
    %v1329 = vsel %vm1299, %v1324, 0
    %1331 = vmatpush.msra.mxu0 0.0
    %1332 = vmatpush.msra.mxu0 0.0
    %1333 = vmatpush.msra.mxu0 0.0
    %1334 = vmatpush.msra.mxu0 0.0
    %1335 = vmatpush.msra.mxu0 0.0
    %1336 = vmatpush.msra.mxu0 0.0
    %1337 = vmatpush.msra.mxu0 0.0
    %1338 = vmatpush.msra.mxu0 0.0
    %1339 = vmatpush.msra.mxu0 0.0
    %1340 = vmatpush.msra.mxu0 0.0
    %1341 = vmatpush.msra.mxu0 0.0
    %1342 = vmatpush.msra.mxu0 0.0
    %1343 = vmatpush.msra.mxu0 0.0
    %1344 = vmatpush.msra.mxu0 0.0
    %1345 = vmatpush.msra.mxu0 0.0
    %1346 = vmatpush.msra.mxu0 %v1329
    %1347 = vmatmul.f32.gmra.mxu0 %v1326
    %v1348 = vpop.f32.mrf.mxu0
    %v1349 = vadd.f32 0.0, %v1348
    %1350 = vdwg.mxu0
    %vm1351 = vcmask 25600
    %1352 = vst.msk [vmem:[#allocation8] sm:$0x3] %vm1351, %v1349
    // Predicated region
    $region46: #{tpu_custom_call.1} parent=1 // pred_check
      _
    $region47: #{tpu_custom_call.1} parent=1 // pred_check_branch
      %1354 = sbr.rel (0) target = $region49
    $region48: #{tpu_custom_call.1} parent=1 // pred_region
      %1356 = vsyncadd [#allocation7], 0
      %s1358 = sshll.u32 [#allocation8], 4
      %s1359 = int_to_ptr.vmem [resolvable:$true] %s1358
      %s1360 = sshll.u32 %s10, 4
      %s1361 = int_to_ptr.hbm [resolvable:$true] %s1360
      %1363 = dma.vmem_to_hbm [thread:$0]  %s1359, 32, %s1361, [#allocation7]
    $region49: #{tpu_custom_call.1} parent=1 // pred_fallthru
      _
    // Predicated region
    $region50: #{tpu_custom_call.1} parent=1 // pred_check
      _
    $region51: #{tpu_custom_call.1} parent=1 // pred_check_branch
      %1365 = sbr.rel (0) target = $region53
    $region52: #{tpu_custom_call.1} parent=1 // pred_region
      %1367 = dma.done [#allocation7], 32
    $region53: #{tpu_custom_call.1} parent=1 // pred_fallthru
      _
    %1368 = vsyncpa [#allocation6], 1
    %1369 = vsyncpa [#allocation7], 1

</llo_original>
